<compile_context>
chip_gen: v5e
topology: v5e:2x2
jax: 0.10.0
libtpu: 0.0.40
codegen_flags: <defaults>
</compile_context>

<pallas_src>
import functools
import math

import jax
import jax.numpy as jnp
import numpy as np
from jax.experimental import pallas as pl
from jax.experimental.pallas import tpu as pltpu

# ----------------------------- module config (defaults) ------------------------
IN_CHANNELS = 4
FEAT_CHANNELS = (64, 128)
VOXEL_SIZE = (0.2, 0.2, 4.0)
PC_RANGE = (0.0, -40.0, -3.0, 70.4, 40.0, 1.0)
BN_EPS = 1e-3                        # norm_cfg = dict(type='BN1d', eps=0.001)

C_PT = IN_CHANNELS                   # raw point channels (x, y, z, intensity)
C_SP = 2                             # spatial features (density, mean distance)
C_H0 = FEAT_CHANNELS[0]              # 64
C_H1 = FEAT_CHANNELS[1]              # 128 (final voxel feature width, lane dense)

# ----------------------------- kernel tiling ------------------------------------
TN = 1024                            # points per step in the point-MLP kernels
PW = 256                             # sorted-point window per scatter step (pow2)
PAD_SEG = np.int32(2 ** 30)          # voxel id for padded points (never matches)

assert (PW & (PW - 1)) == 0, "PW must be a power of two"


def _round_up(x, m):
    return (x + m - 1) // m * m


def _pick_tm():
    """Voxel rows per scatter output block: 128 on <=v5 (128-wide MXU),
    256 on v6e / v7x (2x256x256 MXU; also halves boundary-window duplication)."""
    try:
        kind = jax.devices()[0].device_kind.lower()
    except Exception:
        return 128
    if any(t in kind for t in ("v2", "v3", "v4", "v5")):
        return 128
    return 256


# ================================================================================
# Kernel 1: vfe layer 0  (pre-concat + Linear + folded BN + ReLU), tiled over points
# ================================================================================
def _vfe0_kernel(f_ref, sp_ref, wa_ref, wb_ref, b_ref, o_ref):
    x = f_ref[...].astype(jnp.bfloat16)                   # (TN, 4)
    h = jnp.dot(x, wa_ref[...], preferred_element_type=jnp.float32)
    sp = sp_ref[...]                                      # (TN, 2) f32
    # spatial channels contribute via VPU broadcasts (avoids a K=2 MXU push),
    # kept in f32 (density can be O(100)).
    h = h + sp[:, 0:1] * wb_ref[0:1, :] + sp[:, 1:2] * wb_ref[1:2, :]
    h = h + b_ref[...]
    o_ref[...] = jnp.maximum(h, 0.0).astype(o_ref.dtype)


def vfe_layer0(feat4, sp2, params, *, tn=TN):
    n = feat4.shape[0]
    assert n % tn == 0
    rep = lambda i: (0, 0)
    return pl.pallas_call(
        _vfe0_kernel,
        out_shape=jax.ShapeDtypeStruct((n, C_H0), jnp.bfloat16),
        grid=(n // tn,),
        in_specs=[
            pl.BlockSpec((tn, C_PT), lambda i: (i, 0)),
            pl.BlockSpec((tn, C_SP), lambda i: (i, 0)),
            pl.BlockSpec((C_PT, C_H0), rep),
            pl.BlockSpec((C_SP, C_H0), rep),
            pl.BlockSpec((1, C_H0), rep),
        ],
        out_specs=pl.BlockSpec((tn, C_H0), lambda i: (i, 0)),
        compiler_params=pltpu.CompilerParams(dimension_semantics=("parallel",)),
    )(feat4, sp2, params["w0a"].astype(jnp.bfloat16), params["w0b"], params["b0"])


# ================================================================================
# Kernel 3: vfe layer 1 + feature_scaling (both concats fused as split matmuls)
# ================================================================================
def _vfe1_kernel(pf_ref, mp_ref, sp_ref, w1a_ref, w1b_ref, b1_ref,
                 wfh_ref, wfs_ref, bf_ref, o_ref):
    h = jnp.dot(pf_ref[...], w1a_ref[...], preferred_element_type=jnp.float32)
    h = h + jnp.dot(mp_ref[...], w1b_ref[...], preferred_element_type=jnp.float32)
    h = jnp.maximum(h + b1_ref[...], 0.0)                 # vfe layer 1 output (f32)
    sp = sp_ref[...]
    y = jnp.dot(h.astype(jnp.bfloat16), wfh_ref[...],
                preferred_element_type=jnp.float32)
    y = y + sp[:, 0:1] * wfs_ref[0:1, :] + sp[:, 1:2] * wfs_ref[1:2, :]
    y = y + bf_ref[...]
    o_ref[...] = jnp.maximum(y, 0.0).astype(o_ref.dtype)  # feature_scaling + ReLU


def vfe_layer1(pf0, mapped, sp2, params, *, tn=TN):
    n = pf0.shape[0]
    assert n % tn == 0
    rep = lambda i: (0, 0)
    bf16 = jnp.bfloat16
    return pl.pallas_call(
        _vfe1_kernel,
        out_shape=jax.ShapeDtypeStruct((n, C_H1), jnp.bfloat16),
        grid=(n // tn,),
        in_specs=[
            pl.BlockSpec((tn, C_H0), lambda i: (i, 0)),
            pl.BlockSpec((tn, C_H0), lambda i: (i, 0)),
            pl.BlockSpec((tn, C_SP), lambda i: (i, 0)),
            pl.BlockSpec((C_H0, C_H1), rep),
            pl.BlockSpec((C_H0, C_H1), rep),
            pl.BlockSpec((1, C_H1), rep),
            pl.BlockSpec((C_H1, C_H1), rep),
            pl.BlockSpec((C_SP, C_H1), rep),
            pl.BlockSpec((1, C_H1), rep),
        ],
        out_specs=pl.BlockSpec((tn, C_H1), lambda i: (i, 0)),
        compiler_params=pltpu.CompilerParams(dimension_semantics=("parallel",)),
    )(pf0, mapped, sp2,
      params["w1a"].astype(bf16), params["w1b"].astype(bf16), params["b1"],
      params["wfh"].astype(bf16), params["wfs"], params["bf"])


# ================================================================================
# Kernel 2: DynamicScatter('max') over sorted points, flattened (block, window) grid
# ================================================================================
def _segmax_kernel(sb_ref, sw_ref, sf_ref, segc_ref, segr_ref, feat_ref, out_ref,
                   *, tm, pw, mm_bf16):
    s = pl.program_id(0)

    @pl.when(sf_ref[s] == 1)
    def _init():
        # scattered features are post-ReLU (>= 0): 0 is a safe finite identity,
        # empty / padded voxel rows stay exactly 0 (no -inf / NaN).
        out_ref[...] = jnp.zeros_like(out_ref)

    # ---- forward-only segmented inclusive max scan (Hillis-Steele) --------------
    # pltpu.roll follows jnp.roll: roll(x, d)[i] = x[i - d], so values flow toward
    # higher row indices; the last row of each segment (within the window) ends up
    # holding that segment's window max.  Wrap-around combines are harmless: equal
    # ids across the wrap imply the whole window is one segment whose last row is
    # pw-1 (forced below).
    # TODO(synk): at C=128 the scan may spill vregs; a lane-split would need
    #             sub-tile (64-lane) slices, so it is left to the compiler.
    seg = segc_ref[...]                                   # (pw, 1) int32, sorted
    vals = feat_ref[...].astype(jnp.float32)              # (pw, c), >= 0
    d = 1
    while d < pw:
        same = pltpu.roll(seg, d, axis=0) == seg          # seg[i-d] == seg[i]
        vals = jnp.where(same, jnp.maximum(vals, pltpu.roll(vals, d, axis=0)), vals)
        d *= 2

    # ---- one-hot scatter of segment-last rows, MXU-native (TM, PW) orientation ---
    segr = segr_ref[...]                                  # (1, pw) int32 (same ids)
    col = jax.lax.broadcasted_iota(jnp.int32, (1, pw), 1)
    nxt = pltpu.roll(segr, pw - 1, axis=1)                # segr shifted by -1
    is_last = (segr != nxt) | (col == pw - 1)
    rel = segr - sb_ref[s] * tm                           # voxel row within this block
    sel = is_last & (rel >= 0) & (rel < tm)               # drop other blocks / padding
    rowt = jax.lax.broadcasted_iota(jnp.int32, (tm, pw), 0)
    mm_dtype = jnp.bfloat16 if mm_bf16 else jnp.float32
    onehot = jnp.where(sel & (rel == rowt), 1.0, 0.0).astype(mm_dtype)   # (tm, pw)

    # Each present voxel row receives exactly one value (its segment-window max);
    # the values are bf16-representable, so the bf16 MXU matmul is exact.
    scattered = jnp.dot(onehot, vals.astype(mm_dtype),
                        preferred_element_type=jnp.float32)              # (tm, c)
    out_ref[...] = jnp.maximum(out_ref[...], scattered.astype(out_ref.dtype))


def scatter_max(seg_col, seg_row, feat_sorted, step_block, step_win, step_first,
                m_pad, out_dtype, *, tm, pw=PW):
    n_pad, c = feat_sorted.shape
    assert n_pad % pw == 0 and m_pad % tm == 0
    total = int(step_block.shape[0])
    kern = functools.partial(_segmax_kernel, tm=tm, pw=pw,
                             mm_bf16=bool(feat_sorted.dtype == jnp.bfloat16))

    pt_map = lambda s, sb, sw, sf: (sw[s], 0)
    row_map = lambda s, sb, sw, sf: (0, sw[s])
    out_map = lambda s, sb, sw, sf: (sb[s], 0)

    return pl.pallas_call(
        kern,
        out_shape=jax.ShapeDtypeStruct((m_pad, c), out_dtype),
        grid_spec=pltpu.PrefetchScalarGridSpec(
            num_scalar_prefetch=3,
            grid=(total,),
            in_specs=[
                pl.BlockSpec((pw, 1), pt_map),            # sorted voxel id per point
                pl.BlockSpec((1, pw), row_map),           # same ids, lane layout
                pl.BlockSpec((pw, c), pt_map),            # sorted point features
            ],
            out_specs=pl.BlockSpec((tm, c), out_map),
        ),
        compiler_params=pltpu.CompilerParams(
            dimension_semantics=("arbitrary",)),
    )(step_block, step_win, step_first, seg_col, seg_row, feat_sorted)


# ================================================================================
# parameter init (deterministic synthetic weights, BN folded into the Linears)
# ================================================================================
def init_params(key):
    ks = jax.random.split(key, 12)

    def bn_fold(kg, kb, km, kv, c):
        gamma = 1.0 + 0.1 * jax.random.normal(kg, (c,), jnp.float32)
        beta = 0.05 * jax.random.normal(kb, (c,), jnp.float32)
        mean = 0.1 * jax.random.normal(km, (c,), jnp.float32)
        var = jax.random.uniform(kv, (c,), jnp.float32, 0.5, 1.5)
        scale = gamma / jnp.sqrt(var + BN_EPS)
        shift = beta - mean * scale
        return scale, shift

    # vfe layer 0: Linear(6 -> 64, bias=False) + BN(64) + ReLU   (BN folded)
    w0 = 0.1 * jax.random.normal(ks[0], (C_PT + C_SP, C_H0), jnp.float32)
    s0, t0 = bn_fold(ks[1], ks[2], ks[3], ks[4], C_H0)
    w0f = w0 * s0[None, :]
    # vfe layer 1: Linear(128 -> 128, bias=False) + BN(128) + ReLU  (BN folded)
    w1 = 0.1 * jax.random.normal(ks[5], (2 * C_H0, C_H1), jnp.float32)
    s1, t1 = bn_fold(ks[6], ks[7], ks[8], ks[9], C_H1)
    w1f = w1 * s1[None, :]
    # feature_scaling: Linear(130 -> 128, bias=True)
    wf = 0.1 * jax.random.normal(ks[10], (C_H1 + C_SP, C_H1), jnp.float32)
    bf = 0.05 * jax.random.normal(ks[11], (C_H1,), jnp.float32)

    return dict(
        w0a=w0f[:C_PT], w0b=w0f[C_PT:], b0=t0.reshape(1, C_H0),
        w1a=w1f[:C_H0], w1b=w1f[C_H0:], b1=t1.reshape(1, C_H1),
        wfh=wf[:C_H1], wfs=wf[C_H1:], bf=bf.reshape(1, C_H1),
    )


# ================================================================================
# forward (JAX glue + Pallas hot path)
# ================================================================================
def self_adaptive_vfe_forward(features, coors, params):
    """features: (N, 4) f32, coors: (N, 4) int32 rows [batch, z, y, x]."""
    n = features.shape[0]
    vx, vy, vz = VOXEL_SIZE
    tm = _pick_tm()

    # --- voxel id per point (lexicographic over (batch, z, y, x) rows) ----------
    dz = int(round((PC_RANGE[5] - PC_RANGE[2]) / vz))
    dy = int(round((PC_RANGE[4] - PC_RANGE[1]) / vy))
    dx = int(round((PC_RANGE[3] - PC_RANGE[0]) / vx))
    key = ((coors[:, 0] * dz + coors[:, 1]) * dy + coors[:, 2]) * dx + coors[:, 3]
    uniq, first_idx, inverse, counts = jnp.unique(
        key, return_index=True, return_inverse=True, return_counts=True)
    inverse = inverse.ravel().astype(jnp.int32)
    m = int(uniq.shape[0])                                # dynamic number of voxels
    voxel_coors = coors[first_idx]                        # (M, 4), sorted-unique order

    # --- spatial features: point density + mean in-voxel distance, (N, 2) -------
    safe = jnp.maximum(counts.astype(jnp.float32), 1.0)
    density = safe / (vx * vy * vz)
    xyz = features[:, :3]
    vox_mean = jax.ops.segment_sum(xyz, inverse, num_segments=m) / safe[:, None]
    dist = jnp.sqrt(jnp.sum((xyz - vox_mean[inverse]) ** 2, axis=1))
    vox_mean_dist = jax.ops.segment_sum(dist, inverse, num_segments=m) / safe
    f_spatial = jnp.stack([density[inverse], vox_mean_dist[inverse]], axis=1)

    # --- sort points by voxel id, pad to tile multiples --------------------------
    order = jnp.argsort(inverse)
    seg_sorted = inverse[order]
    feat_sorted = features[order]
    sp_sorted = f_spatial[order]

    mult = TN * PW // math.gcd(TN, PW)
    n_pad = _round_up(max(n, 1), mult)
    pad = n_pad - n
    feat_sorted = jnp.pad(feat_sorted, ((0, pad), (0, 0)))
    sp_sorted = jnp.pad(sp_sorted, ((0, pad), (0, 0)))
    seg_pad = jnp.pad(seg_sorted, (0, pad), constant_values=PAD_SEG).astype(jnp.int32)
    seg_col = seg_pad.reshape(n_pad, 1)                   # (N, 1) for the scan
    seg_row = seg_pad.reshape(1, n_pad)                   # (1, N) for the one-hot

    # --- flattened (voxel-block, point-window) step list (host side, vectorized) --
    # TODO(synk): bucket n_pad / m_pad / total to static sizes and move this
    #             bookkeeping on-device (cumsum / searchsorted) so the whole
    #             wrapper can be jitted without per-shape retraces.
    counts_np = np.asarray(counts)
    starts = np.zeros(m + 1, dtype=np.int64)
    starts[1:] = np.cumsum(counts_np)
    m_pad = _round_up(m, tm)
    m_blocks = m_pad // tm
    blk = np.arange(m_blocks, dtype=np.int64)
    lo = starts[np.minimum(blk * tm, m)]
    hi = starts[np.minimum((blk + 1) * tm, m)]
    w_lo = lo // PW
    w_hi = np.where(hi > lo, -(-hi // PW), w_lo + 1)      # every block gets >= 1 step
    nj = w_hi - w_lo
    total = int(nj.sum())
    offs = np.cumsum(nj) - nj
    rep_blk = np.repeat(blk, nj)
    step_win = np.arange(total, dtype=np.int64) - offs[rep_blk] + w_lo[rep_blk]
    step_win = np.minimum(step_win, n_pad // PW - 1).astype(np.int32)
    step_block = rep_blk.astype(np.int32)
    step_first = np.zeros(total, dtype=np.int32)
    step_first[offs] = 1                                  # first step of each block
    step_block = jnp.asarray(step_block)
    step_win = jnp.asarray(step_win)
    step_first = jnp.asarray(step_first)

    # --- Pallas hot path ----------------------------------------------------------
    pf0 = vfe_layer0(feat_sorted, sp_sorted, params)                     # (n_pad, 64) bf16
    vox0 = scatter_max(seg_col, seg_row, pf0, step_block, step_win, step_first,
                       m_pad, jnp.bfloat16, tm=tm)                       # (m_pad, 64) bf16
    # TODO(synk): fuse this voxel->point gather into vfe_layer1 (contiguous vox0
    #             row windows per sorted point tile) to drop one HBM round trip.
    gather_idx = jnp.minimum(seg_pad, m_pad - 1)
    mapped = jnp.take(vox0, gather_idx, axis=0)                          # (n_pad, 64) bf16
    pf1 = vfe_layer1(pf0, mapped, sp_sorted, params)                     # (n_pad, 128) bf16
    vox1 = scatter_max(seg_col, seg_row, pf1, step_block, step_win, step_first,
                       m_pad, jnp.float32, tm=tm)                        # (m_pad, 128) f32

    return vox1[:m], voxel_coors


# ================================================================================
# pure-JAX reference (mirrors the torch forward, same folded parameters, f32)
# ================================================================================
def reference_forward(features, coors, params):
    vx, vy, vz = VOXEL_SIZE
    dz = int(round((PC_RANGE[5] - PC_RANGE[2]) / vz))
    dy = int(round((PC_RANGE[4] - PC_RANGE[1]) / vy))
    dx = int(round((PC_RANGE[3] - PC_RANGE[0]) / vx))
    key = ((coors[:, 0] * dz + coors[:, 1]) * dy + coors[:, 2]) * dx + coors[:, 3]
    uniq, first_idx, inverse, counts = jnp.unique(
        key, return_index=True, return_inverse=True, return_counts=True)
    inverse = inverse.ravel()
    m = int(uniq.shape[0])

    safe = jnp.maximum(counts.astype(jnp.float32), 1.0)
    density = safe / (vx * vy * vz)
    xyz = features[:, :3]
    vox_mean = jax.ops.segment_sum(xyz, inverse, num_segments=m) / safe[:, None]
    dist = jnp.sqrt(jnp.sum((xyz - vox_mean[inverse]) ** 2, axis=1))
    vox_mean_dist = jax.ops.segment_sum(dist, inverse, num_segments=m) / safe
    sp = jnp.stack([density[inverse], vox_mean_dist[inverse]], axis=1)

    hi = jax.lax.Precision.HIGHEST
    x0 = jnp.concatenate([features, sp], axis=1)
    w0 = jnp.concatenate([params["w0a"], params["w0b"]], axis=0)
    pf0 = jnp.maximum(jnp.dot(x0, w0, precision=hi) + params["b0"], 0.0)
    vox0 = jax.ops.segment_max(pf0, inverse, num_segments=m)
    x1 = jnp.concatenate([pf0, vox0[inverse]], axis=1)
    w1 = jnp.concatenate([params["w1a"], params["w1b"]], axis=0)
    h1 = jnp.maximum(jnp.dot(x1, w1, precision=hi) + params["b1"], 0.0)
    wf = jnp.concatenate([params["wfh"], params["wfs"]], axis=0)
    pf1 = jnp.maximum(
        jnp.dot(jnp.concatenate([h1, sp], axis=1), wf, precision=hi) + params["bf"], 0.0)
    vox1 = jax.ops.segment_max(pf1, inverse, num_segments=m)
    return vox1, coors[first_idx]


# ================================================================================
# demo
# ================================================================================
if __name__ == "__main__":
    key = jax.random.PRNGKey(0)
    kf, kb, ky, kx = jax.random.split(key, 4)

    N = 2048
    features = jax.random.normal(kf, (N, IN_CHANNELS), jnp.float32)
    batch = jax.random.randint(kb, (N,), 0, 2)
    cz = jnp.zeros((N,), jnp.int32)                      # canvas_z == 1 for this cfg
    cy = jax.random.randint(ky, (N,), 0, 16)
    cx = jax.random.randint(kx, (N,), 0, 16)
    coors = jnp.stack([batch, cz, cy, cx], axis=1).astype(jnp.int32)

    params = init_params(jax.random.PRNGKey(42))

    voxel_feats, voxel_coors = self_adaptive_vfe_forward(features, coors, params)
    jax.block_until_ready(voxel_feats)
    jax.block_until_ready(voxel_coors)

    ref_feats, ref_coors = reference_forward(features, coors, params)

    assert voxel_feats.shape == (voxel_coors.shape[0], FEAT_CHANNELS[-1])
    assert bool(jnp.all(jnp.isfinite(voxel_feats)))
    assert bool(jnp.all(voxel_coors == ref_coors))
    # Numerics flag: bf16 MXU operands + bf16 activation storage vs. a pure-f32
    # reference => ~1e-2 relative error; tolerance widened accordingly (the max
    # over points is 1-Lipschitz, so per-point matmul error bounds the voxel error).
    assert bool(jnp.allclose(voxel_feats, ref_feats, rtol=5e-2, atol=2.5e-1))
    print("KERNEL_OK")
</pallas_src>

<mosaic_0001>
module attributes {stable_mosaic.version = 11 : i64} {
  func.func @_vfe0_kernel(%arg0: i32, %arg1: memref<1024x4xf32, #tpu.memory_space<vmem>>, %arg2: memref<1024x2xf32, #tpu.memory_space<vmem>>, %arg3: memref<4x64xbf16, #tpu.memory_space<vmem>>, %arg4: memref<2x64xf32, #tpu.memory_space<vmem>>, %arg5: memref<1x64xf32, #tpu.memory_space<vmem>>, %arg6: memref<1024x64xbf16, #tpu.memory_space<vmem>>) attributes {dimension_semantics = [#tpu.dimension_semantics<parallel>], iteration_bounds = array<i64: 2>, scalar_prefetch = 0 : i64, scratch_operands = 0 : i64, tpu.core_type = #tpu.core_type<tc>, window_params = [{transform_indices = @transform_0, window_bounds = array<i64: 1024, 4>}, {transform_indices = @transform_1, window_bounds = array<i64: 1024, 2>}, {pipeline_mode = #tpu.pipeline_mode<synchronous>, transform_indices = @transform_2, window_bounds = array<i64: 4, 64>}, {pipeline_mode = #tpu.pipeline_mode<synchronous>, transform_indices = @transform_3, window_bounds = array<i64: 2, 64>}, {pipeline_mode = #tpu.pipeline_mode<synchronous>, transform_indices = @transform_4, window_bounds = array<i64: 1, 64>}, {transform_indices = @transform_5, window_bounds = array<i64: 1024, 64>}]} {
    %c0 = arith.constant 0 : index
    %c0_0 = arith.constant 0 : index
    %0 = vector.load %arg1[%c0, %c0_0] : memref<1024x4xf32, #tpu.memory_space<vmem>>, vector<1024x4xf32>
    %1 = arith.truncf %0 : vector<1024x4xf32> to vector<1024x4xbf16>
    %c0_1 = arith.constant 0 : index
    %c0_2 = arith.constant 0 : index
    %2 = vector.load %arg3[%c0_1, %c0_2] : memref<4x64xbf16, #tpu.memory_space<vmem>>, vector<4x64xbf16>
    %cst = arith.constant dense<0.000000e+00> : vector<1024x64xf32>
    %3 = tpu.matmul %1, %2, %cst {dimension_numbers = #tpu.dot_dimension_numbers<[1], [0], [0], [1], [0, 0, 1, 1], [], []>} : vector<1024x4xbf16>, vector<4x64xbf16>, vector<1024x64xf32> -> vector<1024x64xf32>
    %c0_3 = arith.constant 0 : index
    %c0_4 = arith.constant 0 : index
    %4 = vector.load %arg2[%c0_3, %c0_4] : memref<1024x2xf32, #tpu.memory_space<vmem>>, vector<1024x2xf32>
    %5 = vector.extract_strided_slice %4 {offsets = [0, 0], sizes = [1024, 1], strides = [1, 1]} : vector<1024x2xf32> to vector<1024x1xf32>
    %c0_5 = arith.constant 0 : index
    %c0_6 = arith.constant 0 : index
    %6 = vector.load %arg4[%c0_5, %c0_6] : memref<2x64xf32, #tpu.memory_space<vmem>>, vector<1x64xf32>
    %7 = vector.broadcast %5 : vector<1024x1xf32> to vector<1024x64xf32>
    %8 = vector.broadcast %6 : vector<1x64xf32> to vector<1024x64xf32>
    %9 = arith.mulf %7, %8 : vector<1024x64xf32>
    %10 = arith.addf %3, %9 : vector<1024x64xf32>
    %11 = vector.extract_strided_slice %4 {offsets = [0, 1], sizes = [1024, 1], strides = [1, 1]} : vector<1024x2xf32> to vector<1024x1xf32>
    %c1 = arith.constant 1 : index
    %c0_7 = arith.constant 0 : index
    %12 = vector.load %arg4[%c1, %c0_7] : memref<2x64xf32, #tpu.memory_space<vmem>>, vector<1x64xf32>
    %13 = vector.broadcast %11 : vector<1024x1xf32> to vector<1024x64xf32>
    %14 = vector.broadcast %12 : vector<1x64xf32> to vector<1024x64xf32>
    %15 = arith.mulf %13, %14 : vector<1024x64xf32>
    %16 = arith.addf %10, %15 : vector<1024x64xf32>
    %c0_8 = arith.constant 0 : index
    %c0_9 = arith.constant 0 : index
    %17 = vector.load %arg5[%c0_8, %c0_9] : memref<1x64xf32, #tpu.memory_space<vmem>>, vector<1x64xf32>
    %18 = vector.broadcast %17 : vector<1x64xf32> to vector<1024x64xf32>
    %19 = arith.addf %16, %18 : vector<1024x64xf32>
    %cst_10 = arith.constant 0.000000e+00 : f32
    %20 = vector.broadcast %cst_10 : f32 to vector<1024x64xf32>
    %21 = arith.maximumf %19, %20 : vector<1024x64xf32>
    %22 = arith.truncf %21 : vector<1024x64xf32> to vector<1024x64xbf16>
    %c0_11 = arith.constant 0 : index
    %c0_12 = arith.constant 0 : index
    %23 = vector.load %arg6[%c0_11, %c0_12] : memref<1024x64xbf16, #tpu.memory_space<vmem>>, vector<1024x64xbf16>
    tpu.vector_store %arg6[%c0_11, %c0_12], %22 {strides = array<i32>} : memref<1024x64xbf16, #tpu.memory_space<vmem>>, vector<1024x64xbf16>,
    return
  }
  func.func @transform_0(%arg0: i32) -> (i32, i32) {
    %c0_i32 = arith.constant 0 : i32
    %c0_i32_0 = arith.constant 0 : i32
    return %arg0, %c0_i32 : i32, i32
  }
  func.func @transform_1(%arg0: i32) -> (i32, i32) {
    %c0_i32 = arith.constant 0 : i32
    %c0_i32_0 = arith.constant 0 : i32
    return %arg0, %c0_i32 : i32, i32
  }
  func.func @transform_2(%arg0: i32) -> (i32, i32) {
    %c0_i32 = arith.constant 0 : i32
    %c0_i32_0 = arith.constant 0 : i32
    %c0_i32_1 = arith.constant 0 : i32
    return %c0_i32, %c0_i32_0 : i32, i32
  }
  func.func @transform_3(%arg0: i32) -> (i32, i32) {
    %c0_i32 = arith.constant 0 : i32
    %c0_i32_0 = arith.constant 0 : i32
    %c0_i32_1 = arith.constant 0 : i32
    return %c0_i32, %c0_i32_0 : i32, i32
  }
  func.func @transform_4(%arg0: i32) -> (i32, i32) {
    %c0_i32 = arith.constant 0 : i32
    %c0_i32_0 = arith.constant 0 : i32
    %c0_i32_1 = arith.constant 0 : i32
    return %c0_i32, %c0_i32_0 : i32, i32
  }
  func.func @transform_5(%arg0: i32) -> (i32, i32) {
    %c0_i32 = arith.constant 0 : i32
    %c0_i32_0 = arith.constant 0 : i32
    return %arg0, %c0_i32 : i32, i32
  }
}

</mosaic_0001>

<llo_original>
// kernel: tpu_custom_call.1
$region0: #{tpu_custom_call.1}
  #allocation0 [shape = 'u32[]', space=smem, size = 0x4, offset = 0x4, fixed_abs, tag = 'smem constant byte address 0x4 - core index']
  #allocation1 [shape = 'u32[72,128]{1,0:T(1,128)}', space=vmem, size = 0x9000, scoped, tag = 'internal scratch']
  %s0 = inlined_call_operand.vmem [shape: f32[2048,4], index: 0, kind: input, shape index: {}]
  %s1 = inlined_call_operand.vmem [shape: f32[2048,2], index: 1, kind: input, shape index: {}]
  %s2 = inlined_call_operand.vmem [shape: bf16[4,64], index: 2, kind: input, shape index: {}]
  %s3 = inlined_call_operand.vmem [shape: f32[2,64], index: 3, kind: input, shape index: {}]
  %s4 = inlined_call_operand.vmem [shape: f32[1,64], index: 4, kind: input, shape index: {}]
  %s5 = inlined_call_operand.vmem [shape: bf16[2048,64], index: 5, kind: output, shape index: {}]
  %s6 = sld [smem:[#allocation0]]
  $region53: #{tpu_custom_call.1} parent=0
    _
  %s8 = ssub.s32 1, %s6
  %s9 = scalar_select 0, %s8, %s6
  loop: start=0, step=1, limit=4
  $region2: #{tpu_custom_call.1} parent=0 // loop_pre_header
    _
  $region3: #{tpu_custom_call.1} parent=0 // loop_header
    %s11 = sphi 0, %s15
    %p12 = scmp.ge.s32.totalorder %s11, 4
    %s21 = sphi 0, %s23
    %s24 = sphi 0, %s21
    %s25 = sphi 0, %s24
    %s41 = sphi 0, %s25
    %s47 = sphi 0, %s49
    %s50 = sphi 0, %s47
    %s51 = sphi 0, %s50
    %s67 = sphi 0, %s51
    %s71 = sphi 0, %s71
    %s73 = sphi 0, %s71
    %s74 = sphi 0, %s73
    %s88 = sphi 0, %s74
    %s92 = sphi 0, %s92
    %s94 = sphi 0, %s92
    %s95 = sphi 0, %s94
    %s109 = sphi 0, %s95
    %s113 = sphi 0, %s113
    %s115 = sphi 0, %s113
    %s116 = sphi 0, %s115
    %s130 = sphi 0, %s116
    %s136 = sphi 0, %s138
    %s139 = sphi 0, %s136
    %s140 = sphi 0, %s139
    %s156 = sphi 0, %s140
  $region4: #{tpu_custom_call.1} parent=0 // loop_header_branch
    %14 = sbr.rel (%p12) target = $region8
  $region5: #{tpu_custom_call.1} parent=0 // loop_body
    %s16 = ssub.s32 %s11, 1
    %s17 = ssub.s32 %s11, 2
    %s18 = sadd.s32 %s11, 1
    %s19 = ssub.s32 %s11, %s18
    %p20 = scmp.eq.s32.totalorder %s19, 0
    %s22 = sadd.s32 %s21, 1
    %s23 = scalar_select %p20, %s21, %s22
    %p26 = pneg %p20
    %p27 = scmp.eq.s32.totalorder %s11, 1
    %p28 = por %p26, %p27
    %p29 = scmp.ne.s32.totalorder %s21, %s24
    %p30 = scmp.eq.s32.totalorder %s11, 0
    %p31 = por %p29, %p30
    %p32 = scmp.ne.s32.totalorder %s21, %s24
    %p33 = scmp.eq.s32.totalorder %s16, 1
    %p34 = por %p32, %p33
    %p35 = scmp.ne.s32.totalorder %s24, %s25
    %p36 = scmp.eq.s32.totalorder %s16, 0
    %p37 = por %p35, %p36
    %p38 = scmp.ne.s32.totalorder %s24, %s25
    %p39 = scmp.eq.s32.totalorder %s17, 1
    %p40 = por %p38, %p39
    %p42 = scmp.ne.s32.totalorder %s25, %s41
    %p43 = scmp.eq.s32.totalorder %s17, 0
    %p44 = por %p42, %p43
    %s45 = ssub.s32 %s11, %s18
    %p46 = scmp.eq.s32.totalorder %s45, 0
    %s48 = sadd.s32 %s47, 1
    %s49 = scalar_select %p46, %s47, %s48
    %p52 = pneg %p46
    %p53 = scmp.eq.s32.totalorder %s11, 1
    %p54 = por %p52, %p53
    %p55 = scmp.ne.s32.totalorder %s47, %s50
    %p56 = scmp.eq.s32.totalorder %s11, 0
    %p57 = por %p55, %p56
    %p58 = scmp.ne.s32.totalorder %s47, %s50
    %p59 = scmp.eq.s32.totalorder %s16, 1
    %p60 = por %p58, %p59
    %p61 = scmp.ne.s32.totalorder %s50, %s51
    %p62 = scmp.eq.s32.totalorder %s16, 0
    %p63 = por %p61, %p62
    %p64 = scmp.ne.s32.totalorder %s50, %s51
    %p65 = scmp.eq.s32.totalorder %s17, 1
    %p66 = por %p64, %p65
    %p68 = scmp.ne.s32.totalorder %s51, %s67
    %p69 = scmp.eq.s32.totalorder %s17, 0
    %p70 = por %p68, %p69
    %s72 = sadd.s32 %s71, 1
    %p75 = scmp.eq.s32.totalorder %s11, 1
    %p76 = scmp.ne.s32.totalorder %s71, %s73
    %p77 = scmp.eq.s32.totalorder %s11, 0
    %p78 = por %p76, %p77
    %p79 = scmp.ne.s32.totalorder %s71, %s73
    %p80 = scmp.eq.s32.totalorder %s16, 1
    %p81 = por %p79, %p80
    %p82 = scmp.ne.s32.totalorder %s73, %s74
    %p83 = scmp.eq.s32.totalorder %s16, 0
    %p84 = por %p82, %p83
    %p85 = scmp.ne.s32.totalorder %s73, %s74
    %p86 = scmp.eq.s32.totalorder %s17, 1
    %p87 = por %p85, %p86
    %p89 = scmp.ne.s32.totalorder %s74, %s88
    %p90 = scmp.eq.s32.totalorder %s17, 0
    %p91 = por %p89, %p90
    %s93 = sadd.s32 %s92, 1
    %p96 = scmp.eq.s32.totalorder %s11, 1
    %p97 = scmp.ne.s32.totalorder %s92, %s94
    %p98 = scmp.eq.s32.totalorder %s11, 0
    %p99 = por %p97, %p98
    %p100 = scmp.ne.s32.totalorder %s92, %s94
    %p101 = scmp.eq.s32.totalorder %s16, 1
    %p102 = por %p100, %p101
    %p103 = scmp.ne.s32.totalorder %s94, %s95
    %p104 = scmp.eq.s32.totalorder %s16, 0
    %p105 = por %p103, %p104
    %p106 = scmp.ne.s32.totalorder %s94, %s95
    %p107 = scmp.eq.s32.totalorder %s17, 1
    %p108 = por %p106, %p107
    %p110 = scmp.ne.s32.totalorder %s95, %s109
    %p111 = scmp.eq.s32.totalorder %s17, 0
    %p112 = por %p110, %p111
    %s114 = sadd.s32 %s113, 1
    %p117 = scmp.eq.s32.totalorder %s11, 1
    %p118 = scmp.ne.s32.totalorder %s113, %s115
    %p119 = scmp.eq.s32.totalorder %s11, 0
    %p120 = por %p118, %p119
    %p121 = scmp.ne.s32.totalorder %s113, %s115
    %p122 = scmp.eq.s32.totalorder %s16, 1
    %p123 = por %p121, %p122
    %p124 = scmp.ne.s32.totalorder %s115, %s116
    %p125 = scmp.eq.s32.totalorder %s16, 0
    %p126 = por %p124, %p125
    %p127 = scmp.ne.s32.totalorder %s115, %s116
    %p128 = scmp.eq.s32.totalorder %s17, 1
    %p129 = por %p127, %p128
    %p131 = scmp.ne.s32.totalorder %s116, %s130
    %p132 = scmp.eq.s32.totalorder %s17, 0
    %p133 = por %p131, %p132
    %s134 = ssub.s32 %s11, %s18
    %p135 = scmp.eq.s32.totalorder %s134, 0
    %s137 = sadd.s32 %s136, 1
    %s138 = scalar_select %p135, %s136, %s137
    %p141 = pneg %p135
    %p142 = scmp.eq.s32.totalorder %s11, 1
    %p143 = por %p141, %p142
    %p144 = scmp.ne.s32.totalorder %s136, %s139
    %p145 = scmp.eq.s32.totalorder %s11, 0
    %p146 = por %p144, %p145
    %p147 = scmp.ne.s32.totalorder %s136, %s139
    %p148 = scmp.eq.s32.totalorder %s16, 1
    %p149 = por %p147, %p148
    %p150 = scmp.ne.s32.totalorder %s139, %s140
    %p151 = scmp.eq.s32.totalorder %s16, 0
    %p152 = por %p150, %p151
    %p153 = scmp.ne.s32.totalorder %s139, %s140
    %p154 = scmp.eq.s32.totalorder %s17, 1
    %p155 = por %p153, %p154
    %p157 = scmp.ne.s32.totalorder %s140, %s156
    %p158 = scmp.eq.s32.totalorder %s17, 0
    %p159 = por %p157, %p158
    %p160 = scmp.le.s32.totalorder 1, %s11
    %p161 = scmp.lt.s32.totalorder %s11, 3
    %p162 = pnand %p160, %p161
    %p163 = pneg %p162
    // Predicated region
    $region9: #{tpu_custom_call.1} parent=5 // pred_check
      _
    $region10: #{tpu_custom_call.1} parent=5 // pred_check_branch
      %165 = sbr.rel (%p162) target = $region12
    $region11: #{tpu_custom_call.1} parent=5 // pred_region
      %s166 = ssub.s32 %s11, 1
      // Predicated region
      $region13: #{tpu_custom_call.1} parent=11 // pred_check
        %p167 = pneg %p84
      $region14: #{tpu_custom_call.1} parent=11 // pred_check_branch
        %169 = sbr.rel (%p167) target = $region16
      $region15: #{tpu_custom_call.1} parent=11 // pred_region
        _
      $region16: #{tpu_custom_call.1} parent=11 // pred_fallthru
        _
      // Predicated region
      $region17: #{tpu_custom_call.1} parent=11 // pred_check
        %p170 = pneg %p105
      $region18: #{tpu_custom_call.1} parent=11 // pred_check_branch
        %172 = sbr.rel (%p170) target = $region20
      $region19: #{tpu_custom_call.1} parent=11 // pred_region
        _
      $region20: #{tpu_custom_call.1} parent=11 // pred_fallthru
        _
      // Predicated region
      $region21: #{tpu_custom_call.1} parent=11 // pred_check
        %p173 = pneg %p126
      $region22: #{tpu_custom_call.1} parent=11 // pred_check_branch
        %175 = sbr.rel (%p173) target = $region24
      $region23: #{tpu_custom_call.1} parent=11 // pred_region
        _
      $region24: #{tpu_custom_call.1} parent=11 // pred_fallthru
        _
    $region12: #{tpu_custom_call.1} parent=5 // pred_fallthru
      _
    %p176 = scmp.lt.s32.totalorder %s11, 2
    // Predicated region
    $region25: #{tpu_custom_call.1} parent=5 // pred_check
      %p177 = pneg %p176
    $region26: #{tpu_custom_call.1} parent=5 // pred_check_branch
      %179 = sbr.rel (%p177) target = $region28
    $region27: #{tpu_custom_call.1} parent=5 // pred_region
      // Predicated region
      $region29: #{tpu_custom_call.1} parent=27 // pred_check
        %p180 = pneg %p31
      $region30: #{tpu_custom_call.1} parent=27 // pred_check_branch
        %182 = sbr.rel (%p180) target = $region32
      $region31: #{tpu_custom_call.1} parent=27 // pred_region
        %s183 = smul.u32 128, %s11
        %p184 = scmp.lt.s32.totalorder %s183, 255
        %s185 = scalar_select %p184, %s183, 255
        %s186 = smul.addr %s185, 8
        %s187 = scalar_lea.vmem %s0, %s186
        %s188 = smul.u32 128, %s11
      $region32: #{tpu_custom_call.1} parent=27 // pred_fallthru
        _
      // Predicated region
      $region33: #{tpu_custom_call.1} parent=27 // pred_check
        %p189 = pneg %p57
      $region34: #{tpu_custom_call.1} parent=27 // pred_check_branch
        %191 = sbr.rel (%p189) target = $region36
      $region35: #{tpu_custom_call.1} parent=27 // pred_region
        %s192 = smul.u32 128, %s11
        %p193 = scmp.lt.s32.totalorder %s192, 255
        %s194 = scalar_select %p193, %s192, 255
        %s195 = smul.addr %s194, 8
        %s196 = scalar_lea.vmem %s1, %s195
        %s197 = smul.u32 128, %s11
      $region36: #{tpu_custom_call.1} parent=27 // pred_fallthru
        _
    $region28: #{tpu_custom_call.1} parent=5 // pred_fallthru
      _
    %p198 = scmp.le.s32.totalorder 1, %s11
    %p199 = scmp.lt.s32.totalorder %s11, 3
    %p200 = pnand %p198, %p199
    %p201 = pneg %p200
    // Predicated region
    $region37: #{tpu_custom_call.1} parent=5 // pred_check
      _
    $region38: #{tpu_custom_call.1} parent=5 // pred_check_branch
      %203 = sbr.rel (%p200) target = $region40
    $region39: #{tpu_custom_call.1} parent=5 // pred_region
      %s204 = ssub.s32 %s11, 1
      %s205 = smul.u32 128, %s16
      %p206 = scmp.lt.s32.totalorder %s205, 255
      %s207 = scalar_select %p206, %s205, 255
      %s208 = smul.addr %s207, 8
      %s209 = scalar_lea.vmem %s0, %s208
      %p210 = pneg %p37
      %p211 = pneg %p34
      %s212 = smul.u32 128, %s16
      %p213 = scmp.lt.s32.totalorder %s212, 255
      %s214 = scalar_select %p213, %s212, 255
      %s215 = smul.addr %s214, 8
      %s216 = scalar_lea.vmem %s1, %s215
      %p217 = pneg %p63
      %p218 = pneg %p60
      %p219 = pneg %p84
      %p220 = pneg %p81
      %p221 = pneg %p105
      %p222 = pneg %p102
      %p223 = pneg %p126
      %p224 = pneg %p123
      %p225 = pneg %p152
      %p226 = pneg %p149
      %s227 = smul.u32 128, %s16
      %p228 = scmp.lt.s32.totalorder %s227, 255
      %s229 = scalar_select %p228, %s227, 255
      %s230 = smul.addr %s229, 4
      %s231 = scalar_lea.vmem %s5, %s230
      %s232 = smul.u32 128, %s16
      %p233 = scmp.lt.s32.totalorder %s232, 255
      %s234 = scalar_select %p233, %s232, 255
      %s235 = smul.addr %s234, 8
      %s236 = scalar_lea.vmem %s0, %s235
      %s237 = smul.u32 128, %s16
      %s238 = smul.u32 128, %s16
      %p239 = scmp.lt.s32.totalorder %s238, 255
      %s240 = scalar_select %p239, %s238, 255
      %s241 = smul.addr %s240, 8
      %s242 = scalar_lea.vmem %s1, %s241
      %s243 = smul.u32 128, %s16
      %s244 = smul.u32 128, %s16
      %p245 = scmp.lt.s32.totalorder %s244, 255
      %s246 = scalar_select %p245, %s244, 255
      %s247 = smul.addr %s246, 4
      %s248 = scalar_lea.vmem %s5, %s247
      %s249 = smul.u32 128, %s16
      %v251 = vld [vmem:[%s236] sm:$0xff]
      %v252 = vld [vmem:[%s236 + $0x8] sm:$0xff]
      %v253 = vld [vmem:[%s236 + $0x10] sm:$0xff]
      %v254 = vld [vmem:[%s236 + $0x18] sm:$0xff]
      %v255 = vld [vmem:[%s236 + $0x20] sm:$0xff]
      %v256 = vld [vmem:[%s236 + $0x28] sm:$0xff]
      %v257 = vld [vmem:[%s236 + $0x30] sm:$0xff]
      %v258 = vld [vmem:[%s236 + $0x38] sm:$0xff]
      %v259 = vld [vmem:[%s236 + $0x40] sm:$0xff]
      %v260 = vld [vmem:[%s236 + $0x48] sm:$0xff]
      %v261 = vld [vmem:[%s236 + $0x50] sm:$0xff]
      %v262 = vld [vmem:[%s236 + $0x58] sm:$0xff]
      %v263 = vld [vmem:[%s236 + $0x60] sm:$0xff]
      %v264 = vld [vmem:[%s236 + $0x68] sm:$0xff]
      %v265 = vld [vmem:[%s236 + $0x70] sm:$0xff]
      %v266 = vld [vmem:[%s236 + $0x78] sm:$0xff]
      %v267 = vld [vmem:[%s236 + $0x80] sm:$0xff]
      %v268 = vld [vmem:[%s236 + $0x88] sm:$0xff]
      %v269 = vld [vmem:[%s236 + $0x90] sm:$0xff]
      %v270 = vld [vmem:[%s236 + $0x98] sm:$0xff]
      %v271 = vld [vmem:[%s236 + $0xa0] sm:$0xff]
      %v272 = vld [vmem:[%s236 + $0xa8] sm:$0xff]
      %v273 = vld [vmem:[%s236 + $0xb0] sm:$0xff]
      %v274 = vld [vmem:[%s236 + $0xb8] sm:$0xff]
      %v275 = vld [vmem:[%s236 + $0xc0] sm:$0xff]
      %v276 = vld [vmem:[%s236 + $0xc8] sm:$0xff]
      %v277 = vld [vmem:[%s236 + $0xd0] sm:$0xff]
      %v278 = vld [vmem:[%s236 + $0xd8] sm:$0xff]
      %v279 = vld [vmem:[%s236 + $0xe0] sm:$0xff]
      %v280 = vld [vmem:[%s236 + $0xe8] sm:$0xff]
      %v281 = vld [vmem:[%s236 + $0xf0] sm:$0xff]
      %v282 = vld [vmem:[%s236 + $0xf8] sm:$0xff]
      %v283 = vld [vmem:[%s236 + $0x100] sm:$0xff]
      %v284 = vld [vmem:[%s236 + $0x108] sm:$0xff]
      %v285 = vld [vmem:[%s236 + $0x110] sm:$0xff]
      %v286 = vld [vmem:[%s236 + $0x118] sm:$0xff]
      %v287 = vld [vmem:[%s236 + $0x120] sm:$0xff]
      %v288 = vld [vmem:[%s236 + $0x128] sm:$0xff]
      %v289 = vld [vmem:[%s236 + $0x130] sm:$0xff]
      %v290 = vld [vmem:[%s236 + $0x138] sm:$0xff]
      %v291 = vld [vmem:[%s236 + $0x140] sm:$0xff]
      %v292 = vld [vmem:[%s236 + $0x148] sm:$0xff]
      %v293 = vld [vmem:[%s236 + $0x150] sm:$0xff]
      %v294 = vld [vmem:[%s236 + $0x158] sm:$0xff]
      %v295 = vld [vmem:[%s236 + $0x160] sm:$0xff]
      %v296 = vld [vmem:[%s236 + $0x168] sm:$0xff]
      %v297 = vld [vmem:[%s236 + $0x170] sm:$0xff]
      %v298 = vld [vmem:[%s236 + $0x178] sm:$0xff]
      %v299 = vld [vmem:[%s236 + $0x180] sm:$0xff]
      %v300 = vld [vmem:[%s236 + $0x188] sm:$0xff]
      %v301 = vld [vmem:[%s236 + $0x190] sm:$0xff]
      %v302 = vld [vmem:[%s236 + $0x198] sm:$0xff]
      %v303 = vld [vmem:[%s236 + $0x1a0] sm:$0xff]
      %v304 = vld [vmem:[%s236 + $0x1a8] sm:$0xff]
      %v305 = vld [vmem:[%s236 + $0x1b0] sm:$0xff]
      %v306 = vld [vmem:[%s236 + $0x1b8] sm:$0xff]
      %v307 = vld [vmem:[%s236 + $0x1c0] sm:$0xff]
      %v308 = vld [vmem:[%s236 + $0x1c8] sm:$0xff]
      %v309 = vld [vmem:[%s236 + $0x1d0] sm:$0xff]
      %v310 = vld [vmem:[%s236 + $0x1d8] sm:$0xff]
      %v311 = vld [vmem:[%s236 + $0x1e0] sm:$0xff]
      %v312 = vld [vmem:[%s236 + $0x1e8] sm:$0xff]
      %v313 = vld [vmem:[%s236 + $0x1f0] sm:$0xff]
      %v314 = vld [vmem:[%s236 + $0x1f8] sm:$0xff]
      %v315 = vld [vmem:[%s236 + $0x200] sm:$0xff]
      %v316 = vld [vmem:[%s236 + $0x208] sm:$0xff]
      %v317 = vld [vmem:[%s236 + $0x210] sm:$0xff]
      %v318 = vld [vmem:[%s236 + $0x218] sm:$0xff]
      %v319 = vld [vmem:[%s236 + $0x220] sm:$0xff]
      %v320 = vld [vmem:[%s236 + $0x228] sm:$0xff]
      %v321 = vld [vmem:[%s236 + $0x230] sm:$0xff]
      %v322 = vld [vmem:[%s236 + $0x238] sm:$0xff]
      %v323 = vld [vmem:[%s236 + $0x240] sm:$0xff]
      %v324 = vld [vmem:[%s236 + $0x248] sm:$0xff]
      %v325 = vld [vmem:[%s236 + $0x250] sm:$0xff]
      %v326 = vld [vmem:[%s236 + $0x258] sm:$0xff]
      %v327 = vld [vmem:[%s236 + $0x260] sm:$0xff]
      %v328 = vld [vmem:[%s236 + $0x268] sm:$0xff]
      %v329 = vld [vmem:[%s236 + $0x270] sm:$0xff]
      %v330 = vld [vmem:[%s236 + $0x278] sm:$0xff]
      %v331 = vld [vmem:[%s236 + $0x280] sm:$0xff]
      %v332 = vld [vmem:[%s236 + $0x288] sm:$0xff]
      %v333 = vld [vmem:[%s236 + $0x290] sm:$0xff]
      %v334 = vld [vmem:[%s236 + $0x298] sm:$0xff]
      %v335 = vld [vmem:[%s236 + $0x2a0] sm:$0xff]
      %v336 = vld [vmem:[%s236 + $0x2a8] sm:$0xff]
      %v337 = vld [vmem:[%s236 + $0x2b0] sm:$0xff]
      %v338 = vld [vmem:[%s236 + $0x2b8] sm:$0xff]
      %v339 = vld [vmem:[%s236 + $0x2c0] sm:$0xff]
      %v340 = vld [vmem:[%s236 + $0x2c8] sm:$0xff]
      %v341 = vld [vmem:[%s236 + $0x2d0] sm:$0xff]
      %v342 = vld [vmem:[%s236 + $0x2d8] sm:$0xff]
      %v343 = vld [vmem:[%s236 + $0x2e0] sm:$0xff]
      %v344 = vld [vmem:[%s236 + $0x2e8] sm:$0xff]
      %v345 = vld [vmem:[%s236 + $0x2f0] sm:$0xff]
      %v346 = vld [vmem:[%s236 + $0x2f8] sm:$0xff]
      %v347 = vld [vmem:[%s236 + $0x300] sm:$0xff]
      %v348 = vld [vmem:[%s236 + $0x308] sm:$0xff]
      %v349 = vld [vmem:[%s236 + $0x310] sm:$0xff]
      %v350 = vld [vmem:[%s236 + $0x318] sm:$0xff]
      %v351 = vld [vmem:[%s236 + $0x320] sm:$0xff]
      %v352 = vld [vmem:[%s236 + $0x328] sm:$0xff]
      %v353 = vld [vmem:[%s236 + $0x330] sm:$0xff]
      %v354 = vld [vmem:[%s236 + $0x338] sm:$0xff]
      %v355 = vld [vmem:[%s236 + $0x340] sm:$0xff]
      %v356 = vld [vmem:[%s236 + $0x348] sm:$0xff]
      %v357 = vld [vmem:[%s236 + $0x350] sm:$0xff]
      %v358 = vld [vmem:[%s236 + $0x358] sm:$0xff]
      %v359 = vld [vmem:[%s236 + $0x360] sm:$0xff]
      %v360 = vld [vmem:[%s236 + $0x368] sm:$0xff]
      %v361 = vld [vmem:[%s236 + $0x370] sm:$0xff]
      %v362 = vld [vmem:[%s236 + $0x378] sm:$0xff]
      %v363 = vld [vmem:[%s236 + $0x380] sm:$0xff]
      %v364 = vld [vmem:[%s236 + $0x388] sm:$0xff]
      %v365 = vld [vmem:[%s236 + $0x390] sm:$0xff]
      %v366 = vld [vmem:[%s236 + $0x398] sm:$0xff]
      %v367 = vld [vmem:[%s236 + $0x3a0] sm:$0xff]
      %v368 = vld [vmem:[%s236 + $0x3a8] sm:$0xff]
      %v369 = vld [vmem:[%s236 + $0x3b0] sm:$0xff]
      %v370 = vld [vmem:[%s236 + $0x3b8] sm:$0xff]
      %v371 = vld [vmem:[%s236 + $0x3c0] sm:$0xff]
      %v372 = vld [vmem:[%s236 + $0x3c8] sm:$0xff]
      %v373 = vld [vmem:[%s236 + $0x3d0] sm:$0xff]
      %v374 = vld [vmem:[%s236 + $0x3d8] sm:$0xff]
      %v375 = vld [vmem:[%s236 + $0x3e0] sm:$0xff]
      %v376 = vld [vmem:[%s236 + $0x3e8] sm:$0xff]
      %v377 = vld [vmem:[%s236 + $0x3f0] sm:$0xff]
      %v378 = vld [vmem:[%s236 + $0x3f8] sm:$0xff]
      %v379 = vpack.c.bf16 %v252, %v251
      %v380 = vpack.c.bf16 %v254, %v253
      %v381 = vpack.c.bf16 %v256, %v255
      %v382 = vpack.c.bf16 %v258, %v257
      %v383 = vpack.c.bf16 %v260, %v259
      %v384 = vpack.c.bf16 %v262, %v261
      %v385 = vpack.c.bf16 %v264, %v263
      %v386 = vpack.c.bf16 %v266, %v265
      %v387 = vpack.c.bf16 %v268, %v267
      %v388 = vpack.c.bf16 %v270, %v269
      %v389 = vpack.c.bf16 %v272, %v271
      %v390 = vpack.c.bf16 %v274, %v273
      %v391 = vpack.c.bf16 %v276, %v275
      %v392 = vpack.c.bf16 %v278, %v277
      %v393 = vpack.c.bf16 %v280, %v279
      %v394 = vpack.c.bf16 %v282, %v281
      %v395 = vpack.c.bf16 %v284, %v283
      %v396 = vpack.c.bf16 %v286, %v285
      %v397 = vpack.c.bf16 %v288, %v287
      %v398 = vpack.c.bf16 %v290, %v289
      %v399 = vpack.c.bf16 %v292, %v291
      %v400 = vpack.c.bf16 %v294, %v293
      %v401 = vpack.c.bf16 %v296, %v295
      %v402 = vpack.c.bf16 %v298, %v297
      %v403 = vpack.c.bf16 %v300, %v299
      %v404 = vpack.c.bf16 %v302, %v301
      %v405 = vpack.c.bf16 %v304, %v303
      %v406 = vpack.c.bf16 %v306, %v305
      %v407 = vpack.c.bf16 %v308, %v307
      %v408 = vpack.c.bf16 %v310, %v309
      %v409 = vpack.c.bf16 %v312, %v311
      %v410 = vpack.c.bf16 %v314, %v313
      %v411 = vpack.c.bf16 %v316, %v315
      %v412 = vpack.c.bf16 %v318, %v317
      %v413 = vpack.c.bf16 %v320, %v319
      %v414 = vpack.c.bf16 %v322, %v321
      %v415 = vpack.c.bf16 %v324, %v323
      %v416 = vpack.c.bf16 %v326, %v325
      %v417 = vpack.c.bf16 %v328, %v327
      %v418 = vpack.c.bf16 %v330, %v329
      %v419 = vpack.c.bf16 %v332, %v331
      %v420 = vpack.c.bf16 %v334, %v333
      %v421 = vpack.c.bf16 %v336, %v335
      %v422 = vpack.c.bf16 %v338, %v337
      %v423 = vpack.c.bf16 %v340, %v339
      %v424 = vpack.c.bf16 %v342, %v341
      %v425 = vpack.c.bf16 %v344, %v343
      %v426 = vpack.c.bf16 %v346, %v345
      %v427 = vpack.c.bf16 %v348, %v347
      %v428 = vpack.c.bf16 %v350, %v349
      %v429 = vpack.c.bf16 %v352, %v351
      %v430 = vpack.c.bf16 %v354, %v353
      %v431 = vpack.c.bf16 %v356, %v355
      %v432 = vpack.c.bf16 %v358, %v357
      %v433 = vpack.c.bf16 %v360, %v359
      %v434 = vpack.c.bf16 %v362, %v361
      %v435 = vpack.c.bf16 %v364, %v363
      %v436 = vpack.c.bf16 %v366, %v365
      %v437 = vpack.c.bf16 %v368, %v367
      %v438 = vpack.c.bf16 %v370, %v369
      %v439 = vpack.c.bf16 %v372, %v371
      %v440 = vpack.c.bf16 %v374, %v373
      %v441 = vpack.c.bf16 %v376, %v375
      %v442 = vpack.c.bf16 %v378, %v377
      %v443 = vld [vmem:[%s2] sm:$0x3]
      %v444 = vld [vmem:[%s242] sm:$0xff]
      %v445 = vld [vmem:[%s242 + $0x8] sm:$0xff]
      %v446 = vld [vmem:[%s242 + $0x10] sm:$0xff]
      %v447 = vld [vmem:[%s242 + $0x18] sm:$0xff]
      %v448 = vld [vmem:[%s242 + $0x20] sm:$0xff]
      %v449 = vld [vmem:[%s242 + $0x28] sm:$0xff]
      %v450 = vld [vmem:[%s242 + $0x30] sm:$0xff]
      %v451 = vld [vmem:[%s242 + $0x38] sm:$0xff]
      %v452 = vld [vmem:[%s242 + $0x40] sm:$0xff]
      %v453 = vld [vmem:[%s242 + $0x48] sm:$0xff]
      %v454 = vld [vmem:[%s242 + $0x50] sm:$0xff]
      %v455 = vld [vmem:[%s242 + $0x58] sm:$0xff]
      %v456 = vld [vmem:[%s242 + $0x60] sm:$0xff]
      %v457 = vld [vmem:[%s242 + $0x68] sm:$0xff]
      %v458 = vld [vmem:[%s242 + $0x70] sm:$0xff]
      %v459 = vld [vmem:[%s242 + $0x78] sm:$0xff]
      %v460 = vld [vmem:[%s242 + $0x80] sm:$0xff]
      %v461 = vld [vmem:[%s242 + $0x88] sm:$0xff]
      %v462 = vld [vmem:[%s242 + $0x90] sm:$0xff]
      %v463 = vld [vmem:[%s242 + $0x98] sm:$0xff]
      %v464 = vld [vmem:[%s242 + $0xa0] sm:$0xff]
      %v465 = vld [vmem:[%s242 + $0xa8] sm:$0xff]
      %v466 = vld [vmem:[%s242 + $0xb0] sm:$0xff]
      %v467 = vld [vmem:[%s242 + $0xb8] sm:$0xff]
      %v468 = vld [vmem:[%s242 + $0xc0] sm:$0xff]
      %v469 = vld [vmem:[%s242 + $0xc8] sm:$0xff]
      %v470 = vld [vmem:[%s242 + $0xd0] sm:$0xff]
      %v471 = vld [vmem:[%s242 + $0xd8] sm:$0xff]
      %v472 = vld [vmem:[%s242 + $0xe0] sm:$0xff]
      %v473 = vld [vmem:[%s242 + $0xe8] sm:$0xff]
      %v474 = vld [vmem:[%s242 + $0xf0] sm:$0xff]
      %v475 = vld [vmem:[%s242 + $0xf8] sm:$0xff]
      %v476 = vld [vmem:[%s242 + $0x100] sm:$0xff]
      %v477 = vld [vmem:[%s242 + $0x108] sm:$0xff]
      %v478 = vld [vmem:[%s242 + $0x110] sm:$0xff]
      %v479 = vld [vmem:[%s242 + $0x118] sm:$0xff]
      %v480 = vld [vmem:[%s242 + $0x120] sm:$0xff]
      %v481 = vld [vmem:[%s242 + $0x128] sm:$0xff]
      %v482 = vld [vmem:[%s242 + $0x130] sm:$0xff]
      %v483 = vld [vmem:[%s242 + $0x138] sm:$0xff]
      %v484 = vld [vmem:[%s242 + $0x140] sm:$0xff]
      %v485 = vld [vmem:[%s242 + $0x148] sm:$0xff]
      %v486 = vld [vmem:[%s242 + $0x150] sm:$0xff]
      %v487 = vld [vmem:[%s242 + $0x158] sm:$0xff]
      %v488 = vld [vmem:[%s242 + $0x160] sm:$0xff]
      %v489 = vld [vmem:[%s242 + $0x168] sm:$0xff]
      %v490 = vld [vmem:[%s242 + $0x170] sm:$0xff]
      %v491 = vld [vmem:[%s242 + $0x178] sm:$0xff]
      %v492 = vld [vmem:[%s242 + $0x180] sm:$0xff]
      %v493 = vld [vmem:[%s242 + $0x188] sm:$0xff]
      %v494 = vld [vmem:[%s242 + $0x190] sm:$0xff]
      %v495 = vld [vmem:[%s242 + $0x198] sm:$0xff]
      %v496 = vld [vmem:[%s242 + $0x1a0] sm:$0xff]
      %v497 = vld [vmem:[%s242 + $0x1a8] sm:$0xff]
      %v498 = vld [vmem:[%s242 + $0x1b0] sm:$0xff]
      %v499 = vld [vmem:[%s242 + $0x1b8] sm:$0xff]
      %v500 = vld [vmem:[%s242 + $0x1c0] sm:$0xff]
      %v501 = vld [vmem:[%s242 + $0x1c8] sm:$0xff]
      %v502 = vld [vmem:[%s242 + $0x1d0] sm:$0xff]
      %v503 = vld [vmem:[%s242 + $0x1d8] sm:$0xff]
      %v504 = vld [vmem:[%s242 + $0x1e0] sm:$0xff]
      %v505 = vld [vmem:[%s242 + $0x1e8] sm:$0xff]
      %v506 = vld [vmem:[%s242 + $0x1f0] sm:$0xff]
      %v507 = vld [vmem:[%s242 + $0x1f8] sm:$0xff]
      %v508 = vld [vmem:[%s242 + $0x200] sm:$0xff]
      %v509 = vld [vmem:[%s242 + $0x208] sm:$0xff]
      %v510 = vld [vmem:[%s242 + $0x210] sm:$0xff]
      %v511 = vld [vmem:[%s242 + $0x218] sm:$0xff]
      %v512 = vld [vmem:[%s242 + $0x220] sm:$0xff]
      %v513 = vld [vmem:[%s242 + $0x228] sm:$0xff]
      %v514 = vld [vmem:[%s242 + $0x230] sm:$0xff]
      %v515 = vld [vmem:[%s242 + $0x238] sm:$0xff]
      %v516 = vld [vmem:[%s242 + $0x240] sm:$0xff]
      %v517 = vld [vmem:[%s242 + $0x248] sm:$0xff]
      %v518 = vld [vmem:[%s242 + $0x250] sm:$0xff]
      %v519 = vld [vmem:[%s242 + $0x258] sm:$0xff]
      %v520 = vld [vmem:[%s242 + $0x260] sm:$0xff]
      %v521 = vld [vmem:[%s242 + $0x268] sm:$0xff]
      %v522 = vld [vmem:[%s242 + $0x270] sm:$0xff]
      %v523 = vld [vmem:[%s242 + $0x278] sm:$0xff]
      %v524 = vld [vmem:[%s242 + $0x280] sm:$0xff]
      %v525 = vld [vmem:[%s242 + $0x288] sm:$0xff]
      %v526 = vld [vmem:[%s242 + $0x290] sm:$0xff]
      %v527 = vld [vmem:[%s242 + $0x298] sm:$0xff]
      %v528 = vld [vmem:[%s242 + $0x2a0] sm:$0xff]
      %v529 = vld [vmem:[%s242 + $0x2a8] sm:$0xff]
      %v530 = vld [vmem:[%s242 + $0x2b0] sm:$0xff]
      %v531 = vld [vmem:[%s242 + $0x2b8] sm:$0xff]
      %v532 = vld [vmem:[%s242 + $0x2c0] sm:$0xff]
      %v533 = vld [vmem:[%s242 + $0x2c8] sm:$0xff]
      %v534 = vld [vmem:[%s242 + $0x2d0] sm:$0xff]
      %v535 = vld [vmem:[%s242 + $0x2d8] sm:$0xff]
      %v536 = vld [vmem:[%s242 + $0x2e0] sm:$0xff]
      %v537 = vld [vmem:[%s242 + $0x2e8] sm:$0xff]
      %v538 = vld [vmem:[%s242 + $0x2f0] sm:$0xff]
      %v539 = vld [vmem:[%s242 + $0x2f8] sm:$0xff]
      %v540 = vld [vmem:[%s242 + $0x300] sm:$0xff]
      %v541 = vld [vmem:[%s242 + $0x308] sm:$0xff]
      %v542 = vld [vmem:[%s242 + $0x310] sm:$0xff]
      %v543 = vld [vmem:[%s242 + $0x318] sm:$0xff]
      %v544 = vld [vmem:[%s242 + $0x320] sm:$0xff]
      %v545 = vld [vmem:[%s242 + $0x328] sm:$0xff]
      %v546 = vld [vmem:[%s242 + $0x330] sm:$0xff]
      %v547 = vld [vmem:[%s242 + $0x338] sm:$0xff]
      %v548 = vld [vmem:[%s242 + $0x340] sm:$0xff]
      %v549 = vld [vmem:[%s242 + $0x348] sm:$0xff]
      %v550 = vld [vmem:[%s242 + $0x350] sm:$0xff]
      %v551 = vld [vmem:[%s242 + $0x358] sm:$0xff]
      %v552 = vld [vmem:[%s242 + $0x360] sm:$0xff]
      %v553 = vld [vmem:[%s242 + $0x368] sm:$0xff]
      %v554 = vld [vmem:[%s242 + $0x370] sm:$0xff]
      %v555 = vld [vmem:[%s242 + $0x378] sm:$0xff]
      %v556 = vld [vmem:[%s242 + $0x380] sm:$0xff]
      %v557 = vld [vmem:[%s242 + $0x388] sm:$0xff]
      %v558 = vld [vmem:[%s242 + $0x390] sm:$0xff]
      %v559 = vld [vmem:[%s242 + $0x398] sm:$0xff]
      %v560 = vld [vmem:[%s242 + $0x3a0] sm:$0xff]
      %v561 = vld [vmem:[%s242 + $0x3a8] sm:$0xff]
      %v562 = vld [vmem:[%s242 + $0x3b0] sm:$0xff]
      %v563 = vld [vmem:[%s242 + $0x3b8] sm:$0xff]
      %v564 = vld [vmem:[%s242 + $0x3c0] sm:$0xff]
      %v565 = vld [vmem:[%s242 + $0x3c8] sm:$0xff]
      %v566 = vld [vmem:[%s242 + $0x3d0] sm:$0xff]
      %v567 = vld [vmem:[%s242 + $0x3d8] sm:$0xff]
      %v568 = vld [vmem:[%s242 + $0x3e0] sm:$0xff]
      %v569 = vld [vmem:[%s242 + $0x3e8] sm:$0xff]
      %v570 = vld [vmem:[%s242 + $0x3f0] sm:$0xff]
      %v571 = vld [vmem:[%s242 + $0x3f8] sm:$0xff]
      %v572 = vld [vmem:[%s3] sm:$0x1]
      %574 = vset.pattern.permute.xlu0 0
      %575 = vperm.xlu0 %574, %v444
      %v576 = vpop.permute.xlu0 %575
      %579 = vset.pattern.permute.xlu0 0
      %580 = vperm.xlu0 %579, %v445
      %v581 = vpop.permute.xlu0 %580
      %584 = vset.pattern.permute.xlu0 0
      %585 = vperm.xlu0 %584, %v446
      %v586 = vpop.permute.xlu0 %585
      %589 = vset.pattern.permute.xlu0 0
      %590 = vperm.xlu0 %589, %v447
      %v591 = vpop.permute.xlu0 %590
      %594 = vset.pattern.permute.xlu0 0
      %595 = vperm.xlu0 %594, %v448
      %v596 = vpop.permute.xlu0 %595
      %599 = vset.pattern.permute.xlu0 0
      %600 = vperm.xlu0 %599, %v449
      %v601 = vpop.permute.xlu0 %600
      %604 = vset.pattern.permute.xlu0 0
      %605 = vperm.xlu0 %604, %v450
      %v606 = vpop.permute.xlu0 %605
      %609 = vset.pattern.permute.xlu0 0
      %610 = vperm.xlu0 %609, %v451
      %v611 = vpop.permute.xlu0 %610
      %614 = vset.pattern.permute.xlu0 0
      %615 = vperm.xlu0 %614, %v452
      %v616 = vpop.permute.xlu0 %615
      %619 = vset.pattern.permute.xlu0 0
      %620 = vperm.xlu0 %619, %v453
      %v621 = vpop.permute.xlu0 %620
      %624 = vset.pattern.permute.xlu0 0
      %625 = vperm.xlu0 %624, %v454
      %v626 = vpop.permute.xlu0 %625
      %629 = vset.pattern.permute.xlu0 0
      %630 = vperm.xlu0 %629, %v455
      %v631 = vpop.permute.xlu0 %630
      %634 = vset.pattern.permute.xlu0 0
      %635 = vperm.xlu0 %634, %v456
      %v636 = vpop.permute.xlu0 %635
      %639 = vset.pattern.permute.xlu0 0
      %640 = vperm.xlu0 %639, %v457
      %v641 = vpop.permute.xlu0 %640
      %644 = vset.pattern.permute.xlu0 0
      %645 = vperm.xlu0 %644, %v458
      %v646 = vpop.permute.xlu0 %645
      %649 = vset.pattern.permute.xlu0 0
      %650 = vperm.xlu0 %649, %v459
      %v651 = vpop.permute.xlu0 %650
      %654 = vset.pattern.permute.xlu0 0
      %655 = vperm.xlu0 %654, %v460
      %v656 = vpop.permute.xlu0 %655
      %659 = vset.pattern.permute.xlu0 0
      %660 = vperm.xlu0 %659, %v461
      %v661 = vpop.permute.xlu0 %660
      %664 = vset.pattern.permute.xlu0 0
      %665 = vperm.xlu0 %664, %v462
      %v666 = vpop.permute.xlu0 %665
      %669 = vset.pattern.permute.xlu0 0
      %670 = vperm.xlu0 %669, %v463
      %v671 = vpop.permute.xlu0 %670
      %674 = vset.pattern.permute.xlu0 0
      %675 = vperm.xlu0 %674, %v464
      %v676 = vpop.permute.xlu0 %675
      %679 = vset.pattern.permute.xlu0 0
      %680 = vperm.xlu0 %679, %v465
      %v681 = vpop.permute.xlu0 %680
      %684 = vset.pattern.permute.xlu0 0
      %685 = vperm.xlu0 %684, %v466
      %v686 = vpop.permute.xlu0 %685
      %689 = vset.pattern.permute.xlu0 0
      %690 = vperm.xlu0 %689, %v467
      %v691 = vpop.permute.xlu0 %690
      %694 = vset.pattern.permute.xlu0 0
      %695 = vperm.xlu0 %694, %v468
      %v696 = vpop.permute.xlu0 %695
      %699 = vset.pattern.permute.xlu0 0
      %700 = vperm.xlu0 %699, %v469
      %v701 = vpop.permute.xlu0 %700
      %704 = vset.pattern.permute.xlu0 0
      %705 = vperm.xlu0 %704, %v470
      %v706 = vpop.permute.xlu0 %705
      %709 = vset.pattern.permute.xlu0 0
      %710 = vperm.xlu0 %709, %v471
      %v711 = vpop.permute.xlu0 %710
      %714 = vset.pattern.permute.xlu0 0
      %715 = vperm.xlu0 %714, %v472
      %v716 = vpop.permute.xlu0 %715
      %719 = vset.pattern.permute.xlu0 0
      %720 = vperm.xlu0 %719, %v473
      %v721 = vpop.permute.xlu0 %720
      %724 = vset.pattern.permute.xlu0 0
      %725 = vperm.xlu0 %724, %v474
      %v726 = vpop.permute.xlu0 %725
      %729 = vset.pattern.permute.xlu0 0
      %730 = vperm.xlu0 %729, %v475
      %v731 = vpop.permute.xlu0 %730
      %734 = vset.pattern.permute.xlu0 0
      %735 = vperm.xlu0 %734, %v476
      %v736 = vpop.permute.xlu0 %735
      %739 = vset.pattern.permute.xlu0 0
      %740 = vperm.xlu0 %739, %v477
      %v741 = vpop.permute.xlu0 %740
      %744 = vset.pattern.permute.xlu0 0
      %745 = vperm.xlu0 %744, %v478
      %v746 = vpop.permute.xlu0 %745
      %749 = vset.pattern.permute.xlu0 0
      %750 = vperm.xlu0 %749, %v479
      %v751 = vpop.permute.xlu0 %750
      %754 = vset.pattern.permute.xlu0 0
      %755 = vperm.xlu0 %754, %v480
      %v756 = vpop.permute.xlu0 %755
      %759 = vset.pattern.permute.xlu0 0
      %760 = vperm.xlu0 %759, %v481
      %v761 = vpop.permute.xlu0 %760
      %764 = vset.pattern.permute.xlu0 0
      %765 = vperm.xlu0 %764, %v482
      %v766 = vpop.permute.xlu0 %765
      %769 = vset.pattern.permute.xlu0 0
      %770 = vperm.xlu0 %769, %v483
      %v771 = vpop.permute.xlu0 %770
      %774 = vset.pattern.permute.xlu0 0
      %775 = vperm.xlu0 %774, %v484
      %v776 = vpop.permute.xlu0 %775
      %779 = vset.pattern.permute.xlu0 0
      %780 = vperm.xlu0 %779, %v485
      %v781 = vpop.permute.xlu0 %780
      %784 = vset.pattern.permute.xlu0 0
      %785 = vperm.xlu0 %784, %v486
      %v786 = vpop.permute.xlu0 %785
      %789 = vset.pattern.permute.xlu0 0
      %790 = vperm.xlu0 %789, %v487
      %v791 = vpop.permute.xlu0 %790
      %794 = vset.pattern.permute.xlu0 0
      %795 = vperm.xlu0 %794, %v488
      %v796 = vpop.permute.xlu0 %795
      %799 = vset.pattern.permute.xlu0 0
      %800 = vperm.xlu0 %799, %v489
      %v801 = vpop.permute.xlu0 %800
      %804 = vset.pattern.permute.xlu0 0
      %805 = vperm.xlu0 %804, %v490
      %v806 = vpop.permute.xlu0 %805
      %809 = vset.pattern.permute.xlu0 0
      %810 = vperm.xlu0 %809, %v491
      %v811 = vpop.permute.xlu0 %810
      %814 = vset.pattern.permute.xlu0 0
      %815 = vperm.xlu0 %814, %v492
      %v816 = vpop.permute.xlu0 %815
      %819 = vset.pattern.permute.xlu0 0
      %820 = vperm.xlu0 %819, %v493
      %v821 = vpop.permute.xlu0 %820
      %824 = vset.pattern.permute.xlu0 0
      %825 = vperm.xlu0 %824, %v494
      %v826 = vpop.permute.xlu0 %825
      %829 = vset.pattern.permute.xlu0 0
      %830 = vperm.xlu0 %829, %v495
      %v831 = vpop.permute.xlu0 %830
      %834 = vset.pattern.permute.xlu0 0
      %835 = vperm.xlu0 %834, %v496
      %v836 = vpop.permute.xlu0 %835
      %839 = vset.pattern.permute.xlu0 0
      %840 = vperm.xlu0 %839, %v497
      %v841 = vpop.permute.xlu0 %840
      %844 = vset.pattern.permute.xlu0 0
      %845 = vperm.xlu0 %844, %v498
      %v846 = vpop.permute.xlu0 %845
      %849 = vset.pattern.permute.xlu0 0
      %850 = vperm.xlu0 %849, %v499
      %v851 = vpop.permute.xlu0 %850
      %854 = vset.pattern.permute.xlu0 0
      %855 = vperm.xlu0 %854, %v500
      %v856 = vpop.permute.xlu0 %855
      %859 = vset.pattern.permute.xlu0 0
      %860 = vperm.xlu0 %859, %v501
      %v861 = vpop.permute.xlu0 %860
      %864 = vset.pattern.permute.xlu0 0
      %865 = vperm.xlu0 %864, %v502
      %v866 = vpop.permute.xlu0 %865
      %869 = vset.pattern.permute.xlu0 0
      %870 = vperm.xlu0 %869, %v503
      %v871 = vpop.permute.xlu0 %870
      %874 = vset.pattern.permute.xlu0 0
      %875 = vperm.xlu0 %874, %v504
      %v876 = vpop.permute.xlu0 %875
      %879 = vset.pattern.permute.xlu0 0
      %880 = vperm.xlu0 %879, %v505
      %v881 = vpop.permute.xlu0 %880
      %884 = vset.pattern.permute.xlu0 0
      %885 = vperm.xlu0 %884, %v506
      %v886 = vpop.permute.xlu0 %885
      %889 = vset.pattern.permute.xlu0 0
      %890 = vperm.xlu0 %889, %v507
      %v891 = vpop.permute.xlu0 %890
      %894 = vset.pattern.permute.xlu0 0
      %895 = vperm.xlu0 %894, %v508
      %v896 = vpop.permute.xlu0 %895
      %899 = vset.pattern.permute.xlu0 0
      %900 = vperm.xlu0 %899, %v509
      %v901 = vpop.permute.xlu0 %900
      %904 = vset.pattern.permute.xlu0 0
      %905 = vperm.xlu0 %904, %v510
      %v906 = vpop.permute.xlu0 %905
      %909 = vset.pattern.permute.xlu0 0
      %910 = vperm.xlu0 %909, %v511
      %v911 = vpop.permute.xlu0 %910
      %914 = vset.pattern.permute.xlu0 0
      %915 = vperm.xlu0 %914, %v512
      %v916 = vpop.permute.xlu0 %915
      %919 = vset.pattern.permute.xlu0 0
      %920 = vperm.xlu0 %919, %v513
      %v921 = vpop.permute.xlu0 %920
      %924 = vset.pattern.permute.xlu0 0
      %925 = vperm.xlu0 %924, %v514
      %v926 = vpop.permute.xlu0 %925
      %929 = vset.pattern.permute.xlu0 0
      %930 = vperm.xlu0 %929, %v515
      %v931 = vpop.permute.xlu0 %930
      %934 = vset.pattern.permute.xlu0 0
      %935 = vperm.xlu0 %934, %v516
      %v936 = vpop.permute.xlu0 %935
      %939 = vset.pattern.permute.xlu0 0
      %940 = vperm.xlu0 %939, %v517
      %v941 = vpop.permute.xlu0 %940
      %944 = vset.pattern.permute.xlu0 0
      %945 = vperm.xlu0 %944, %v518
      %v946 = vpop.permute.xlu0 %945
      %949 = vset.pattern.permute.xlu0 0
      %950 = vperm.xlu0 %949, %v519
      %v951 = vpop.permute.xlu0 %950
      %954 = vset.pattern.permute.xlu0 0
      %955 = vperm.xlu0 %954, %v520
      %v956 = vpop.permute.xlu0 %955
      %959 = vset.pattern.permute.xlu0 0
      %960 = vperm.xlu0 %959, %v521
      %v961 = vpop.permute.xlu0 %960
      %964 = vset.pattern.permute.xlu0 0
      %965 = vperm.xlu0 %964, %v522
      %v966 = vpop.permute.xlu0 %965
      %969 = vset.pattern.permute.xlu0 0
      %970 = vperm.xlu0 %969, %v523
      %v971 = vpop.permute.xlu0 %970
      %974 = vset.pattern.permute.xlu0 0
      %975 = vperm.xlu0 %974, %v524
      %v976 = vpop.permute.xlu0 %975
      %979 = vset.pattern.permute.xlu0 0
      %980 = vperm.xlu0 %979, %v525
      %v981 = vpop.permute.xlu0 %980
      %984 = vset.pattern.permute.xlu0 0
      %985 = vperm.xlu0 %984, %v526
      %v986 = vpop.permute.xlu0 %985
      %989 = vset.pattern.permute.xlu0 0
      %990 = vperm.xlu0 %989, %v527
      %v991 = vpop.permute.xlu0 %990
      %994 = vset.pattern.permute.xlu0 0
      %995 = vperm.xlu0 %994, %v528
      %v996 = vpop.permute.xlu0 %995
      %999 = vset.pattern.permute.xlu0 0
      %1000 = vperm.xlu0 %999, %v529
      %v1001 = vpop.permute.xlu0 %1000
      %1004 = vset.pattern.permute.xlu0 0
      %1005 = vperm.xlu0 %1004, %v530
      %v1006 = vpop.permute.xlu0 %1005
      %1009 = vset.pattern.permute.xlu0 0
      %1010 = vperm.xlu0 %1009, %v531
      %v1011 = vpop.permute.xlu0 %1010
      %1014 = vset.pattern.permute.xlu0 0
      %1015 = vperm.xlu0 %1014, %v532
      %v1016 = vpop.permute.xlu0 %1015
      %1019 = vset.pattern.permute.xlu0 0
      %1020 = vperm.xlu0 %1019, %v533
      %v1021 = vpop.permute.xlu0 %1020
      %1024 = vset.pattern.permute.xlu0 0
      %1025 = vperm.xlu0 %1024, %v534
      %v1026 = vpop.permute.xlu0 %1025
      %1029 = vset.pattern.permute.xlu0 0
      %1030 = vperm.xlu0 %1029, %v535
      %v1031 = vpop.permute.xlu0 %1030
      %1034 = vset.pattern.permute.xlu0 0
      %1035 = vperm.xlu0 %1034, %v536
      %v1036 = vpop.permute.xlu0 %1035
      %1039 = vset.pattern.permute.xlu0 0
      %1040 = vperm.xlu0 %1039, %v537
      %v1041 = vpop.permute.xlu0 %1040
      %1044 = vset.pattern.permute.xlu0 0
      %1045 = vperm.xlu0 %1044, %v538
      %v1046 = vpop.permute.xlu0 %1045
      %1049 = vset.pattern.permute.xlu0 0
      %1050 = vperm.xlu0 %1049, %v539
      %v1051 = vpop.permute.xlu0 %1050
      %1054 = vset.pattern.permute.xlu0 0
      %1055 = vperm.xlu0 %1054, %v540
      %v1056 = vpop.permute.xlu0 %1055
      %1059 = vset.pattern.permute.xlu0 0
      %1060 = vperm.xlu0 %1059, %v541
      %v1061 = vpop.permute.xlu0 %1060
      %1064 = vset.pattern.permute.xlu0 0
      %1065 = vperm.xlu0 %1064, %v542
      %v1066 = vpop.permute.xlu0 %1065
      %1069 = vset.pattern.permute.xlu0 0
      %1070 = vperm.xlu0 %1069, %v543
      %v1071 = vpop.permute.xlu0 %1070
      %1074 = vset.pattern.permute.xlu0 0
      %1075 = vperm.xlu0 %1074, %v544
      %v1076 = vpop.permute.xlu0 %1075
      %1079 = vset.pattern.permute.xlu0 0
      %1080 = vperm.xlu0 %1079, %v545
      %v1081 = vpop.permute.xlu0 %1080
      %1084 = vset.pattern.permute.xlu0 0
      %1085 = vperm.xlu0 %1084, %v546
      %v1086 = vpop.permute.xlu0 %1085
      %1089 = vset.pattern.permute.xlu0 0
      %1090 = vperm.xlu0 %1089, %v547
      %v1091 = vpop.permute.xlu0 %1090
      %1094 = vset.pattern.permute.xlu0 0
      %1095 = vperm.xlu0 %1094, %v548
      %v1096 = vpop.permute.xlu0 %1095
      %1099 = vset.pattern.permute.xlu0 0
      %1100 = vperm.xlu0 %1099, %v549
      %v1101 = vpop.permute.xlu0 %1100
      %1104 = vset.pattern.permute.xlu0 0
      %1105 = vperm.xlu0 %1104, %v550
      %v1106 = vpop.permute.xlu0 %1105
      %1109 = vset.pattern.permute.xlu0 0
      %1110 = vperm.xlu0 %1109, %v551
      %v1111 = vpop.permute.xlu0 %1110
      %1114 = vset.pattern.permute.xlu0 0
      %1115 = vperm.xlu0 %1114, %v552
      %v1116 = vpop.permute.xlu0 %1115
      %1119 = vset.pattern.permute.xlu0 0
      %1120 = vperm.xlu0 %1119, %v553
      %v1121 = vpop.permute.xlu0 %1120
      %1124 = vset.pattern.permute.xlu0 0
      %1125 = vperm.xlu0 %1124, %v554
      %v1126 = vpop.permute.xlu0 %1125
      %1129 = vset.pattern.permute.xlu0 0
      %1130 = vperm.xlu0 %1129, %v555
      %v1131 = vpop.permute.xlu0 %1130
      %1134 = vset.pattern.permute.xlu0 0
      %1135 = vperm.xlu0 %1134, %v556
      %v1136 = vpop.permute.xlu0 %1135
      %1139 = vset.pattern.permute.xlu0 0
      %1140 = vperm.xlu0 %1139, %v557
      %v1141 = vpop.permute.xlu0 %1140
      %1144 = vset.pattern.permute.xlu0 0
      %1145 = vperm.xlu0 %1144, %v558
      %v1146 = vpop.permute.xlu0 %1145
      %1149 = vset.pattern.permute.xlu0 0
      %1150 = vperm.xlu0 %1149, %v559
      %v1151 = vpop.permute.xlu0 %1150
      %1154 = vset.pattern.permute.xlu0 0
      %1155 = vperm.xlu0 %1154, %v560
      %v1156 = vpop.permute.xlu0 %1155
      %1159 = vset.pattern.permute.xlu0 0
      %1160 = vperm.xlu0 %1159, %v561
      %v1161 = vpop.permute.xlu0 %1160
      %1164 = vset.pattern.permute.xlu0 0
      %1165 = vperm.xlu0 %1164, %v562
      %v1166 = vpop.permute.xlu0 %1165
      %1169 = vset.pattern.permute.xlu0 0
      %1170 = vperm.xlu0 %1169, %v563
      %v1171 = vpop.permute.xlu0 %1170
      %1174 = vset.pattern.permute.xlu0 0
      %1175 = vperm.xlu0 %1174, %v564
      %v1176 = vpop.permute.xlu0 %1175
      %1179 = vset.pattern.permute.xlu0 0
      %1180 = vperm.xlu0 %1179, %v565
      %v1181 = vpop.permute.xlu0 %1180
      %1184 = vset.pattern.permute.xlu0 0
      %1185 = vperm.xlu0 %1184, %v566
      %v1186 = vpop.permute.xlu0 %1185
      %1189 = vset.pattern.permute.xlu0 0
      %1190 = vperm.xlu0 %1189, %v567
      %v1191 = vpop.permute.xlu0 %1190
      %1194 = vset.pattern.permute.xlu0 0
      %1195 = vperm.xlu0 %1194, %v568
      %v1196 = vpop.permute.xlu0 %1195
      %1199 = vset.pattern.permute.xlu0 0
      %1200 = vperm.xlu0 %1199, %v569
      %v1201 = vpop.permute.xlu0 %1200
      %1204 = vset.pattern.permute.xlu0 0
      %1205 = vperm.xlu0 %1204, %v570
      %v1206 = vpop.permute.xlu0 %1205
      %1209 = vset.pattern.permute.xlu0 0
      %1210 = vperm.xlu0 %1209, %v571
      %v1211 = vpop.permute.xlu0 %1210
      %v1213 = vperm.slane %v572, 0
      %v1214 = vmul.f32 %v576, %v1213
      %v1215 = vmul.f32 %v581, %v1213
      %v1216 = vmul.f32 %v586, %v1213
      %v1217 = vmul.f32 %v591, %v1213
      %v1218 = vmul.f32 %v596, %v1213
      %v1219 = vmul.f32 %v601, %v1213
      %v1220 = vmul.f32 %v606, %v1213
      %v1221 = vmul.f32 %v611, %v1213
      %v1222 = vmul.f32 %v616, %v1213
      %v1223 = vmul.f32 %v621, %v1213
      %v1224 = vmul.f32 %v626, %v1213
      %v1225 = vmul.f32 %v631, %v1213
      %v1226 = vmul.f32 %v636, %v1213
      %v1227 = vmul.f32 %v641, %v1213
      %v1228 = vmul.f32 %v646, %v1213
      %v1229 = vmul.f32 %v651, %v1213
      %v1230 = vmul.f32 %v656, %v1213
      %v1231 = vmul.f32 %v661, %v1213
      %v1232 = vmul.f32 %v666, %v1213
      %v1233 = vmul.f32 %v671, %v1213
      %v1234 = vmul.f32 %v676, %v1213
      %v1235 = vmul.f32 %v681, %v1213
      %v1236 = vmul.f32 %v686, %v1213
      %v1237 = vmul.f32 %v691, %v1213
      %v1238 = vmul.f32 %v696, %v1213
      %v1239 = vmul.f32 %v701, %v1213
      %v1240 = vmul.f32 %v706, %v1213
      %v1241 = vmul.f32 %v711, %v1213
      %v1242 = vmul.f32 %v716, %v1213
      %v1243 = vmul.f32 %v721, %v1213
      %v1244 = vmul.f32 %v726, %v1213
      %v1245 = vmul.f32 %v731, %v1213
      %v1246 = vmul.f32 %v736, %v1213
      %v1247 = vmul.f32 %v741, %v1213
      %v1248 = vmul.f32 %v746, %v1213
      %v1249 = vmul.f32 %v751, %v1213
      %v1250 = vmul.f32 %v756, %v1213
      %v1251 = vmul.f32 %v761, %v1213
      %v1252 = vmul.f32 %v766, %v1213
      %v1253 = vmul.f32 %v771, %v1213
      %v1254 = vmul.f32 %v776, %v1213
      %v1255 = vmul.f32 %v781, %v1213
      %v1256 = vmul.f32 %v786, %v1213
      %v1257 = vmul.f32 %v791, %v1213
      %v1258 = vmul.f32 %v796, %v1213
      %v1259 = vmul.f32 %v801, %v1213
      %v1260 = vmul.f32 %v806, %v1213
      %v1261 = vmul.f32 %v811, %v1213
      %v1262 = vmul.f32 %v816, %v1213
      %v1263 = vmul.f32 %v821, %v1213
      %v1264 = vmul.f32 %v826, %v1213
      %v1265 = vmul.f32 %v831, %v1213
      %v1266 = vmul.f32 %v836, %v1213
      %v1267 = vmul.f32 %v841, %v1213
      %v1268 = vmul.f32 %v846, %v1213
      %v1269 = vmul.f32 %v851, %v1213
      %v1270 = vmul.f32 %v856, %v1213
      %v1271 = vmul.f32 %v861, %v1213
      %v1272 = vmul.f32 %v866, %v1213
      %v1273 = vmul.f32 %v871, %v1213
      %v1274 = vmul.f32 %v876, %v1213
      %v1275 = vmul.f32 %v881, %v1213
      %v1276 = vmul.f32 %v886, %v1213
      %v1277 = vmul.f32 %v891, %v1213
      %v1278 = vmul.f32 %v896, %v1213
      %v1279 = vmul.f32 %v901, %v1213
      %v1280 = vmul.f32 %v906, %v1213
      %v1281 = vmul.f32 %v911, %v1213
      %v1282 = vmul.f32 %v916, %v1213
      %v1283 = vmul.f32 %v921, %v1213
      %v1284 = vmul.f32 %v926, %v1213
      %v1285 = vmul.f32 %v931, %v1213
      %v1286 = vmul.f32 %v936, %v1213
      %v1287 = vmul.f32 %v941, %v1213
      %v1288 = vmul.f32 %v946, %v1213
      %v1289 = vmul.f32 %v951, %v1213
      %v1290 = vmul.f32 %v956, %v1213
      %v1291 = vmul.f32 %v961, %v1213
      %v1292 = vmul.f32 %v966, %v1213
      %v1293 = vmul.f32 %v971, %v1213
      %v1294 = vmul.f32 %v976, %v1213
      %v1295 = vmul.f32 %v981, %v1213
      %v1296 = vmul.f32 %v986, %v1213
      %v1297 = vmul.f32 %v991, %v1213
      %v1298 = vmul.f32 %v996, %v1213
      %v1299 = vmul.f32 %v1001, %v1213
      %v1300 = vmul.f32 %v1006, %v1213
      %v1301 = vmul.f32 %v1011, %v1213
      %v1302 = vmul.f32 %v1016, %v1213
      %v1303 = vmul.f32 %v1021, %v1213
      %v1304 = vmul.f32 %v1026, %v1213
      %v1305 = vmul.f32 %v1031, %v1213
      %v1306 = vmul.f32 %v1036, %v1213
      %v1307 = vmul.f32 %v1041, %v1213
      %v1308 = vmul.f32 %v1046, %v1213
      %v1309 = vmul.f32 %v1051, %v1213
      %v1310 = vmul.f32 %v1056, %v1213
      %v1311 = vmul.f32 %v1061, %v1213
      %v1312 = vmul.f32 %v1066, %v1213
      %v1313 = vmul.f32 %v1071, %v1213
      %v1314 = vmul.f32 %v1076, %v1213
      %v1315 = vmul.f32 %v1081, %v1213
      %v1316 = vmul.f32 %v1086, %v1213
      %v1317 = vmul.f32 %v1091, %v1213
      %v1318 = vmul.f32 %v1096, %v1213
      %v1319 = vmul.f32 %v1101, %v1213
      %v1320 = vmul.f32 %v1106, %v1213
      %v1321 = vmul.f32 %v1111, %v1213
      %v1322 = vmul.f32 %v1116, %v1213
      %v1323 = vmul.f32 %v1121, %v1213
      %v1324 = vmul.f32 %v1126, %v1213
      %v1325 = vmul.f32 %v1131, %v1213
      %v1326 = vmul.f32 %v1136, %v1213
      %v1327 = vmul.f32 %v1141, %v1213
      %v1328 = vmul.f32 %v1146, %v1213
      %v1329 = vmul.f32 %v1151, %v1213
      %v1330 = vmul.f32 %v1156, %v1213
      %v1331 = vmul.f32 %v1161, %v1213
      %v1332 = vmul.f32 %v1166, %v1213
      %v1333 = vmul.f32 %v1171, %v1213
      %v1334 = vmul.f32 %v1176, %v1213
      %v1335 = vmul.f32 %v1181, %v1213
      %v1336 = vmul.f32 %v1186, %v1213
      %v1337 = vmul.f32 %v1191, %v1213
      %v1338 = vmul.f32 %v1196, %v1213
      %v1339 = vmul.f32 %v1201, %v1213
      %v1340 = vmul.f32 %v1206, %v1213
      %v1341 = vmul.f32 %v1211, %v1213
      %vm1342 = vcmask 31744
      %v1344 = vsel %vm1342, %v379, 0
      %v1347 = vsel %vm1342, %v380, 0
      %v1350 = vsel %vm1342, %v381, 0
      %v1353 = vsel %vm1342, %v382, 0
      %v1356 = vsel %vm1342, %v383, 0
      %v1359 = vsel %vm1342, %v384, 0
      %v1362 = vsel %vm1342, %v385, 0
      %v1365 = vsel %vm1342, %v386, 0
      %v1368 = vsel %vm1342, %v387, 0
      %v1371 = vsel %vm1342, %v388, 0
      %v1374 = vsel %vm1342, %v389, 0
      %v1377 = vsel %vm1342, %v390, 0
      %v1380 = vsel %vm1342, %v391, 0
      %v1383 = vsel %vm1342, %v392, 0
      %v1386 = vsel %vm1342, %v393, 0
      %v1389 = vsel %vm1342, %v394, 0
      %v1392 = vsel %vm1342, %v395, 0
      %v1395 = vsel %vm1342, %v396, 0
      %v1398 = vsel %vm1342, %v397, 0
      %v1401 = vsel %vm1342, %v398, 0
      %v1404 = vsel %vm1342, %v399, 0
      %v1407 = vsel %vm1342, %v400, 0
      %v1410 = vsel %vm1342, %v401, 0
      %v1413 = vsel %vm1342, %v402, 0
      %v1416 = vsel %vm1342, %v403, 0
      %v1419 = vsel %vm1342, %v404, 0
      %v1422 = vsel %vm1342, %v405, 0
      %v1425 = vsel %vm1342, %v406, 0
      %v1428 = vsel %vm1342, %v407, 0
      %v1431 = vsel %vm1342, %v408, 0
      %v1434 = vsel %vm1342, %v409, 0
      %v1437 = vsel %vm1342, %v410, 0
      %v1440 = vsel %vm1342, %v411, 0
      %v1443 = vsel %vm1342, %v412, 0
      %v1446 = vsel %vm1342, %v413, 0
      %v1449 = vsel %vm1342, %v414, 0
      %v1452 = vsel %vm1342, %v415, 0
      %v1455 = vsel %vm1342, %v416, 0
      %v1458 = vsel %vm1342, %v417, 0
      %v1461 = vsel %vm1342, %v418, 0
      %v1464 = vsel %vm1342, %v419, 0
      %v1467 = vsel %vm1342, %v420, 0
      %v1470 = vsel %vm1342, %v421, 0
      %v1473 = vsel %vm1342, %v422, 0
      %v1476 = vsel %vm1342, %v423, 0
      %v1479 = vsel %vm1342, %v424, 0
      %v1482 = vsel %vm1342, %v425, 0
      %v1485 = vsel %vm1342, %v426, 0
      %v1488 = vsel %vm1342, %v427, 0
      %v1491 = vsel %vm1342, %v428, 0
      %v1494 = vsel %vm1342, %v429, 0
      %v1497 = vsel %vm1342, %v430, 0
      %v1500 = vsel %vm1342, %v431, 0
      %v1503 = vsel %vm1342, %v432, 0
      %v1506 = vsel %vm1342, %v433, 0
      %v1509 = vsel %vm1342, %v434, 0
      %v1512 = vsel %vm1342, %v435, 0
      %v1515 = vsel %vm1342, %v436, 0
      %v1518 = vsel %vm1342, %v437, 0
      %v1521 = vsel %vm1342, %v438, 0
      %v1524 = vsel %vm1342, %v439, 0
      %v1527 = vsel %vm1342, %v440, 0
      %v1530 = vsel %vm1342, %v441, 0
      %v1533 = vsel %vm1342, %v442, 0
      %vm1535 = vcmask 1041408
      %v1537 = vsel %vm1535, %v443, 0
      %1539 = vmatpush.bf16.msra.mxu0 0
      %1540 = vmatpush.bf16.msra.mxu0 0
      %1541 = vmatpush.bf16.msra.mxu0 0
      %1542 = vmatpush.bf16.msra.mxu0 0
      %1543 = vmatpush.bf16.msra.mxu0 0
      %1544 = vmatpush.bf16.msra.mxu0 0
      %1545 = vmatpush.bf16.msra.mxu0 0
      %1546 = vmatpush.bf16.msra.mxu0 %v1537
      %1547 = vmatmul.bf16.gmra.mxu0 %v1344
      %v1548 = vpop.f32.mrf.mxu0
      %v1549 = vadd.f32 %v1214, %v1548
      %v1550 = vpop.f32.mrf.mxu0
      %v1551 = vadd.f32 %v1215, %v1550
      %1552 = vmatmul.bf16.gmra.mxu0 %v1347
      %v1553 = vpop.f32.mrf.mxu0
      %v1554 = vadd.f32 %v1216, %v1553
      %v1555 = vpop.f32.mrf.mxu0
      %v1556 = vadd.f32 %v1217, %v1555
      %1557 = vmatmul.bf16.gmra.mxu0 %v1350
      %v1558 = vpop.f32.mrf.mxu0
      %v1559 = vadd.f32 %v1218, %v1558
      %v1560 = vpop.f32.mrf.mxu0
      %v1561 = vadd.f32 %v1219, %v1560
      %1562 = vmatmul.bf16.gmra.mxu0 %v1353
      %v1563 = vpop.f32.mrf.mxu0
      %v1564 = vadd.f32 %v1220, %v1563
      %v1565 = vpop.f32.mrf.mxu0
      %v1566 = vadd.f32 %v1221, %v1565
      %1567 = vmatmul.bf16.gmra.mxu0 %v1356
      %v1568 = vpop.f32.mrf.mxu0
      %v1569 = vadd.f32 %v1222, %v1568
      %v1570 = vpop.f32.mrf.mxu0
      %v1571 = vadd.f32 %v1223, %v1570
      %1572 = vmatmul.bf16.gmra.mxu0 %v1359
      %v1573 = vpop.f32.mrf.mxu0
      %v1574 = vadd.f32 %v1224, %v1573
      %v1575 = vpop.f32.mrf.mxu0
      %v1576 = vadd.f32 %v1225, %v1575
      %1577 = vmatmul.bf16.gmra.mxu0 %v1362
      %v1578 = vpop.f32.mrf.mxu0
      %v1579 = vadd.f32 %v1226, %v1578
      %v1580 = vpop.f32.mrf.mxu0
      %v1581 = vadd.f32 %v1227, %v1580
      %1582 = vmatmul.bf16.gmra.mxu0 %v1365
      %v1583 = vpop.f32.mrf.mxu0
      %v1584 = vadd.f32 %v1228, %v1583
      %v1585 = vpop.f32.mrf.mxu0
      %v1586 = vadd.f32 %v1229, %v1585
      %1587 = vmatmul.bf16.gmra.mxu0 %v1368
      %v1588 = vpop.f32.mrf.mxu0
      %v1589 = vadd.f32 %v1230, %v1588
      %v1590 = vpop.f32.mrf.mxu0
      %v1591 = vadd.f32 %v1231, %v1590
      %1592 = vmatmul.bf16.gmra.mxu0 %v1371
      %v1593 = vpop.f32.mrf.mxu0
      %v1594 = vadd.f32 %v1232, %v1593
      %v1595 = vpop.f32.mrf.mxu0
      %v1596 = vadd.f32 %v1233, %v1595
      %1597 = vmatmul.bf16.gmra.mxu0 %v1374
      %v1598 = vpop.f32.mrf.mxu0
      %v1599 = vadd.f32 %v1234, %v1598
      %v1600 = vpop.f32.mrf.mxu0
      %v1601 = vadd.f32 %v1235, %v1600
      %1602 = vmatmul.bf16.gmra.mxu0 %v1377
      %v1603 = vpop.f32.mrf.mxu0
      %v1604 = vadd.f32 %v1236, %v1603
      %v1605 = vpop.f32.mrf.mxu0
      %v1606 = vadd.f32 %v1237, %v1605
      %1607 = vmatmul.bf16.gmra.mxu0 %v1380
      %v1608 = vpop.f32.mrf.mxu0
      %v1609 = vadd.f32 %v1238, %v1608
      %v1610 = vpop.f32.mrf.mxu0
      %v1611 = vadd.f32 %v1239, %v1610
      %1612 = vmatmul.bf16.gmra.mxu0 %v1383
      %v1613 = vpop.f32.mrf.mxu0
      %v1614 = vadd.f32 %v1240, %v1613
      %v1615 = vpop.f32.mrf.mxu0
      %v1616 = vadd.f32 %v1241, %v1615
      %1617 = vmatmul.bf16.gmra.mxu0 %v1386
      %v1618 = vpop.f32.mrf.mxu0
      %v1619 = vadd.f32 %v1242, %v1618
      %v1620 = vpop.f32.mrf.mxu0
      %v1621 = vadd.f32 %v1243, %v1620
      %1622 = vmatmul.bf16.gmra.mxu0 %v1389
      %v1623 = vpop.f32.mrf.mxu0
      %v1624 = vadd.f32 %v1244, %v1623
      %v1625 = vpop.f32.mrf.mxu0
      %v1626 = vadd.f32 %v1245, %v1625
      %1627 = vmatmul.bf16.gmra.mxu0 %v1392
      %v1628 = vpop.f32.mrf.mxu0
      %v1629 = vadd.f32 %v1246, %v1628
      %v1630 = vpop.f32.mrf.mxu0
      %v1631 = vadd.f32 %v1247, %v1630
      %1632 = vmatmul.bf16.gmra.mxu0 %v1395
      %v1633 = vpop.f32.mrf.mxu0
      %v1634 = vadd.f32 %v1248, %v1633
      %v1635 = vpop.f32.mrf.mxu0
      %v1636 = vadd.f32 %v1249, %v1635
      %1637 = vmatmul.bf16.gmra.mxu0 %v1398
      %v1638 = vpop.f32.mrf.mxu0
      %v1639 = vadd.f32 %v1250, %v1638
      %v1640 = vpop.f32.mrf.mxu0
      %v1641 = vadd.f32 %v1251, %v1640
      %1642 = vmatmul.bf16.gmra.mxu0 %v1401
      %v1643 = vpop.f32.mrf.mxu0
      %v1644 = vadd.f32 %v1252, %v1643
      %v1645 = vpop.f32.mrf.mxu0
      %v1646 = vadd.f32 %v1253, %v1645
      %1647 = vmatmul.bf16.gmra.mxu0 %v1404
      %v1648 = vpop.f32.mrf.mxu0
      %v1649 = vadd.f32 %v1254, %v1648
      %v1650 = vpop.f32.mrf.mxu0
      %v1651 = vadd.f32 %v1255, %v1650
      %1652 = vmatmul.bf16.gmra.mxu0 %v1407
      %v1653 = vpop.f32.mrf.mxu0
      %v1654 = vadd.f32 %v1256, %v1653
      %v1655 = vpop.f32.mrf.mxu0
      %v1656 = vadd.f32 %v1257, %v1655
      %1657 = vmatmul.bf16.gmra.mxu0 %v1410
      %v1658 = vpop.f32.mrf.mxu0
      %v1659 = vadd.f32 %v1258, %v1658
      %v1660 = vpop.f32.mrf.mxu0
      %v1661 = vadd.f32 %v1259, %v1660
      %1662 = vmatmul.bf16.gmra.mxu0 %v1413
      %v1663 = vpop.f32.mrf.mxu0
      %v1664 = vadd.f32 %v1260, %v1663
      %v1665 = vpop.f32.mrf.mxu0
      %v1666 = vadd.f32 %v1261, %v1665
      %1667 = vmatmul.bf16.gmra.mxu0 %v1416
      %v1668 = vpop.f32.mrf.mxu0
      %v1669 = vadd.f32 %v1262, %v1668
      %v1670 = vpop.f32.mrf.mxu0
      %v1671 = vadd.f32 %v1263, %v1670
      %1672 = vmatmul.bf16.gmra.mxu0 %v1419
      %v1673 = vpop.f32.mrf.mxu0
      %v1674 = vadd.f32 %v1264, %v1673
      %v1675 = vpop.f32.mrf.mxu0
      %v1676 = vadd.f32 %v1265, %v1675
      %1677 = vmatmul.bf16.gmra.mxu0 %v1422
      %v1678 = vpop.f32.mrf.mxu0
      %v1679 = vadd.f32 %v1266, %v1678
      %v1680 = vpop.f32.mrf.mxu0
      %v1681 = vadd.f32 %v1267, %v1680
      %1682 = vmatmul.bf16.gmra.mxu0 %v1425
      %v1683 = vpop.f32.mrf.mxu0
      %v1684 = vadd.f32 %v1268, %v1683
      %v1685 = vpop.f32.mrf.mxu0
      %v1686 = vadd.f32 %v1269, %v1685
      %1687 = vmatmul.bf16.gmra.mxu0 %v1428
      %v1688 = vpop.f32.mrf.mxu0
      %v1689 = vadd.f32 %v1270, %v1688
      %v1690 = vpop.f32.mrf.mxu0
      %v1691 = vadd.f32 %v1271, %v1690
      %1692 = vmatmul.bf16.gmra.mxu0 %v1431
      %v1693 = vpop.f32.mrf.mxu0
      %v1694 = vadd.f32 %v1272, %v1693
      %v1695 = vpop.f32.mrf.mxu0
      %v1696 = vadd.f32 %v1273, %v1695
      %1697 = vmatmul.bf16.gmra.mxu0 %v1434
      %v1698 = vpop.f32.mrf.mxu0
      %v1699 = vadd.f32 %v1274, %v1698
      %v1700 = vpop.f32.mrf.mxu0
      %v1701 = vadd.f32 %v1275, %v1700
      %1702 = vmatmul.bf16.gmra.mxu0 %v1437
      %v1703 = vpop.f32.mrf.mxu0
      %v1704 = vadd.f32 %v1276, %v1703
      %v1705 = vpop.f32.mrf.mxu0
      %v1706 = vadd.f32 %v1277, %v1705
      %1707 = vmatmul.bf16.gmra.mxu0 %v1440
      %v1708 = vpop.f32.mrf.mxu0
      %v1709 = vadd.f32 %v1278, %v1708
      %v1710 = vpop.f32.mrf.mxu0
      %v1711 = vadd.f32 %v1279, %v1710
      %1712 = vmatmul.bf16.gmra.mxu0 %v1443
      %v1713 = vpop.f32.mrf.mxu0
      %v1714 = vadd.f32 %v1280, %v1713
      %v1715 = vpop.f32.mrf.mxu0
      %v1716 = vadd.f32 %v1281, %v1715
      %1717 = vmatmul.bf16.gmra.mxu0 %v1446
      %v1718 = vpop.f32.mrf.mxu0
      %v1719 = vadd.f32 %v1282, %v1718
      %v1720 = vpop.f32.mrf.mxu0
      %v1721 = vadd.f32 %v1283, %v1720
      %1722 = vmatmul.bf16.gmra.mxu0 %v1449
      %v1723 = vpop.f32.mrf.mxu0
      %v1724 = vadd.f32 %v1284, %v1723
      %v1725 = vpop.f32.mrf.mxu0
      %v1726 = vadd.f32 %v1285, %v1725
      %1727 = vmatmul.bf16.gmra.mxu0 %v1452
      %v1728 = vpop.f32.mrf.mxu0
      %v1729 = vadd.f32 %v1286, %v1728
      %v1730 = vpop.f32.mrf.mxu0
      %v1731 = vadd.f32 %v1287, %v1730
      %1732 = vmatmul.bf16.gmra.mxu0 %v1455
      %v1733 = vpop.f32.mrf.mxu0
      %v1734 = vadd.f32 %v1288, %v1733
      %v1735 = vpop.f32.mrf.mxu0
      %v1736 = vadd.f32 %v1289, %v1735
      %1737 = vmatmul.bf16.gmra.mxu0 %v1458
      %v1738 = vpop.f32.mrf.mxu0
      %v1739 = vadd.f32 %v1290, %v1738
      %v1740 = vpop.f32.mrf.mxu0
      %v1741 = vadd.f32 %v1291, %v1740
      %1742 = vmatmul.bf16.gmra.mxu0 %v1461
      %v1743 = vpop.f32.mrf.mxu0
      %v1744 = vadd.f32 %v1292, %v1743
      %v1745 = vpop.f32.mrf.mxu0
      %v1746 = vadd.f32 %v1293, %v1745
      %1747 = vmatmul.bf16.gmra.mxu0 %v1464
      %v1748 = vpop.f32.mrf.mxu0
      %v1749 = vadd.f32 %v1294, %v1748
      %v1750 = vpop.f32.mrf.mxu0
      %v1751 = vadd.f32 %v1295, %v1750
      %1752 = vmatmul.bf16.gmra.mxu0 %v1467
      %v1753 = vpop.f32.mrf.mxu0
      %v1754 = vadd.f32 %v1296, %v1753
      %v1755 = vpop.f32.mrf.mxu0
      %v1756 = vadd.f32 %v1297, %v1755
      %1757 = vmatmul.bf16.gmra.mxu0 %v1470
      %v1758 = vpop.f32.mrf.mxu0
      %v1759 = vadd.f32 %v1298, %v1758
      %v1760 = vpop.f32.mrf.mxu0
      %v1761 = vadd.f32 %v1299, %v1760
      %1762 = vmatmul.bf16.gmra.mxu0 %v1473
      %v1763 = vpop.f32.mrf.mxu0
      %v1764 = vadd.f32 %v1300, %v1763
      %v1765 = vpop.f32.mrf.mxu0
      %v1766 = vadd.f32 %v1301, %v1765
      %1767 = vmatmul.bf16.gmra.mxu0 %v1476
      %v1768 = vpop.f32.mrf.mxu0
      %v1769 = vadd.f32 %v1302, %v1768
      %v1770 = vpop.f32.mrf.mxu0
      %v1771 = vadd.f32 %v1303, %v1770
      %1772 = vmatmul.bf16.gmra.mxu0 %v1479
      %v1773 = vpop.f32.mrf.mxu0
      %v1774 = vadd.f32 %v1304, %v1773
      %v1775 = vpop.f32.mrf.mxu0
      %v1776 = vadd.f32 %v1305, %v1775
      %1777 = vmatmul.bf16.gmra.mxu0 %v1482
      %v1778 = vpop.f32.mrf.mxu0
      %v1779 = vadd.f32 %v1306, %v1778
      %v1780 = vpop.f32.mrf.mxu0
      %v1781 = vadd.f32 %v1307, %v1780
      %1782 = vmatmul.bf16.gmra.mxu0 %v1485
      %v1783 = vpop.f32.mrf.mxu0
      %v1784 = vadd.f32 %v1308, %v1783
      %v1785 = vpop.f32.mrf.mxu0
      %v1786 = vadd.f32 %v1309, %v1785
      %1787 = vmatmul.bf16.gmra.mxu0 %v1488
      %v1788 = vpop.f32.mrf.mxu0
      %v1789 = vadd.f32 %v1310, %v1788
      %v1790 = vpop.f32.mrf.mxu0
      %v1791 = vadd.f32 %v1311, %v1790
      %1792 = vmatmul.bf16.gmra.mxu0 %v1491
      %v1793 = vpop.f32.mrf.mxu0
      %v1794 = vadd.f32 %v1312, %v1793
      %v1795 = vpop.f32.mrf.mxu0
      %v1796 = vadd.f32 %v1313, %v1795
      %1797 = vmatmul.bf16.gmra.mxu0 %v1494
      %v1798 = vpop.f32.mrf.mxu0
      %v1799 = vadd.f32 %v1314, %v1798
      %v1800 = vpop.f32.mrf.mxu0
      %v1801 = vadd.f32 %v1315, %v1800
      %1802 = vmatmul.bf16.gmra.mxu0 %v1497
      %v1803 = vpop.f32.mrf.mxu0
      %v1804 = vadd.f32 %v1316, %v1803
      %v1805 = vpop.f32.mrf.mxu0
      %v1806 = vadd.f32 %v1317, %v1805
      %1807 = vmatmul.bf16.gmra.mxu0 %v1500
      %v1808 = vpop.f32.mrf.mxu0
      %v1809 = vadd.f32 %v1318, %v1808
      %v1810 = vpop.f32.mrf.mxu0
      %v1811 = vadd.f32 %v1319, %v1810
      %1812 = vmatmul.bf16.gmra.mxu0 %v1503
      %v1813 = vpop.f32.mrf.mxu0
      %v1814 = vadd.f32 %v1320, %v1813
      %v1815 = vpop.f32.mrf.mxu0
      %v1816 = vadd.f32 %v1321, %v1815
      %1817 = vmatmul.bf16.gmra.mxu0 %v1506
      %v1818 = vpop.f32.mrf.mxu0
      %v1819 = vadd.f32 %v1322, %v1818
      %v1820 = vpop.f32.mrf.mxu0
      %v1821 = vadd.f32 %v1323, %v1820
      %1822 = vmatmul.bf16.gmra.mxu0 %v1509
      %v1823 = vpop.f32.mrf.mxu0
      %v1824 = vadd.f32 %v1324, %v1823
      %v1825 = vpop.f32.mrf.mxu0
      %v1826 = vadd.f32 %v1325, %v1825
      %1827 = vmatmul.bf16.gmra.mxu0 %v1512
      %v1828 = vpop.f32.mrf.mxu0
      %v1829 = vadd.f32 %v1326, %v1828
      %v1830 = vpop.f32.mrf.mxu0
      %v1831 = vadd.f32 %v1327, %v1830
      %1832 = vmatmul.bf16.gmra.mxu0 %v1515
      %v1833 = vpop.f32.mrf.mxu0
      %v1834 = vadd.f32 %v1328, %v1833
      %v1835 = vpop.f32.mrf.mxu0
      %v1836 = vadd.f32 %v1329, %v1835
      %1837 = vmatmul.bf16.gmra.mxu0 %v1518
      %v1838 = vpop.f32.mrf.mxu0
      %v1839 = vadd.f32 %v1330, %v1838
      %v1840 = vpop.f32.mrf.mxu0
      %v1841 = vadd.f32 %v1331, %v1840
      %1842 = vmatmul.bf16.gmra.mxu0 %v1521
      %v1843 = vpop.f32.mrf.mxu0
      %v1844 = vadd.f32 %v1332, %v1843
      %v1845 = vpop.f32.mrf.mxu0
      %v1846 = vadd.f32 %v1333, %v1845
      %1847 = vmatmul.bf16.gmra.mxu0 %v1524
      %v1848 = vpop.f32.mrf.mxu0
      %v1849 = vadd.f32 %v1334, %v1848
      %v1850 = vpop.f32.mrf.mxu0
      %v1851 = vadd.f32 %v1335, %v1850
      %1852 = vmatmul.bf16.gmra.mxu0 %v1527
      %v1853 = vpop.f32.mrf.mxu0
      %v1854 = vadd.f32 %v1336, %v1853
      %v1855 = vpop.f32.mrf.mxu0
      %v1856 = vadd.f32 %v1337, %v1855
      %1857 = vmatmul.bf16.gmra.mxu0 %v1530
      %v1858 = vpop.f32.mrf.mxu0
      %v1859 = vadd.f32 %v1338, %v1858
      %v1860 = vpop.f32.mrf.mxu0
      %v1861 = vadd.f32 %v1339, %v1860
      %1862 = vmatmul.bf16.gmra.mxu0 %v1533
      %v1863 = vpop.f32.mrf.mxu0
      %v1864 = vadd.f32 %v1340, %v1863
      %v1865 = vpop.f32.mrf.mxu0
      %v1866 = vadd.f32 %v1341, %v1865
      %1867 = vdwg.mxu0
      %v1868 = vld [vmem:[%s3 + $0x1] sm:$0x1]
      %1869 = vset.pattern.permute.xlu0 1
      %1870 = vperm.xlu0 %1869, %v444
      %v1871 = vpop.permute.xlu0 %1870
      %1873 = vset.pattern.permute.xlu0 1
      %1874 = vperm.xlu0 %1873, %v445
      %v1875 = vpop.permute.xlu0 %1874
      %1877 = vset.pattern.permute.xlu0 1
      %1878 = vperm.xlu0 %1877, %v446
      %v1879 = vpop.permute.xlu0 %1878
      %1881 = vset.pattern.permute.xlu0 1
      %1882 = vperm.xlu0 %1881, %v447
      %v1883 = vpop.permute.xlu0 %1882
      %1885 = vset.pattern.permute.xlu0 1
      %1886 = vperm.xlu0 %1885, %v448
      %v1887 = vpop.permute.xlu0 %1886
      %1889 = vset.pattern.permute.xlu0 1
      %1890 = vperm.xlu0 %1889, %v449
      %v1891 = vpop.permute.xlu0 %1890
      %1893 = vset.pattern.permute.xlu0 1
      %1894 = vperm.xlu0 %1893, %v450
      %v1895 = vpop.permute.xlu0 %1894
      %1897 = vset.pattern.permute.xlu0 1
      %1898 = vperm.xlu0 %1897, %v451
      %v1899 = vpop.permute.xlu0 %1898
      %1901 = vset.pattern.permute.xlu0 1
      %1902 = vperm.xlu0 %1901, %v452
      %v1903 = vpop.permute.xlu0 %1902
      %1905 = vset.pattern.permute.xlu0 1
      %1906 = vperm.xlu0 %1905, %v453
      %v1907 = vpop.permute.xlu0 %1906
      %1909 = vset.pattern.permute.xlu0 1
      %1910 = vperm.xlu0 %1909, %v454
      %v1911 = vpop.permute.xlu0 %1910
      %1913 = vset.pattern.permute.xlu0 1
      %1914 = vperm.xlu0 %1913, %v455
      %v1915 = vpop.permute.xlu0 %1914
      %1917 = vset.pattern.permute.xlu0 1
      %1918 = vperm.xlu0 %1917, %v456
      %v1919 = vpop.permute.xlu0 %1918
      %1921 = vset.pattern.permute.xlu0 1
      %1922 = vperm.xlu0 %1921, %v457
      %v1923 = vpop.permute.xlu0 %1922
      %1925 = vset.pattern.permute.xlu0 1
      %1926 = vperm.xlu0 %1925, %v458
      %v1927 = vpop.permute.xlu0 %1926
      %1929 = vset.pattern.permute.xlu0 1
      %1930 = vperm.xlu0 %1929, %v459
      %v1931 = vpop.permute.xlu0 %1930
      %1933 = vset.pattern.permute.xlu0 1
      %1934 = vperm.xlu0 %1933, %v460
      %v1935 = vpop.permute.xlu0 %1934
      %1937 = vset.pattern.permute.xlu0 1
      %1938 = vperm.xlu0 %1937, %v461
      %v1939 = vpop.permute.xlu0 %1938
      %1941 = vset.pattern.permute.xlu0 1
      %1942 = vperm.xlu0 %1941, %v462
      %v1943 = vpop.permute.xlu0 %1942
      %1945 = vset.pattern.permute.xlu0 1
      %1946 = vperm.xlu0 %1945, %v463
      %v1947 = vpop.permute.xlu0 %1946
      %1949 = vset.pattern.permute.xlu0 1
      %1950 = vperm.xlu0 %1949, %v464
      %v1951 = vpop.permute.xlu0 %1950
      %1953 = vset.pattern.permute.xlu0 1
      %1954 = vperm.xlu0 %1953, %v465
      %v1955 = vpop.permute.xlu0 %1954
      %1957 = vset.pattern.permute.xlu0 1
      %1958 = vperm.xlu0 %1957, %v466
      %v1959 = vpop.permute.xlu0 %1958
      %1961 = vset.pattern.permute.xlu0 1
      %1962 = vperm.xlu0 %1961, %v467
      %v1963 = vpop.permute.xlu0 %1962
      %1965 = vset.pattern.permute.xlu0 1
      %1966 = vperm.xlu0 %1965, %v468
      %v1967 = vpop.permute.xlu0 %1966
      %1969 = vset.pattern.permute.xlu0 1
      %1970 = vperm.xlu0 %1969, %v469
      %v1971 = vpop.permute.xlu0 %1970
      %1973 = vset.pattern.permute.xlu0 1
      %1974 = vperm.xlu0 %1973, %v470
      %v1975 = vpop.permute.xlu0 %1974
      %1977 = vset.pattern.permute.xlu0 1
      %1978 = vperm.xlu0 %1977, %v471
      %v1979 = vpop.permute.xlu0 %1978
      %1981 = vset.pattern.permute.xlu0 1
      %1982 = vperm.xlu0 %1981, %v472
      %v1983 = vpop.permute.xlu0 %1982
      %1985 = vset.pattern.permute.xlu0 1
      %1986 = vperm.xlu0 %1985, %v473
      %v1987 = vpop.permute.xlu0 %1986
      %1989 = vset.pattern.permute.xlu0 1
      %1990 = vperm.xlu0 %1989, %v474
      %v1991 = vpop.permute.xlu0 %1990
      %1993 = vset.pattern.permute.xlu0 1
      %1994 = vperm.xlu0 %1993, %v475
      %v1995 = vpop.permute.xlu0 %1994
      %1997 = vset.pattern.permute.xlu0 1
      %1998 = vperm.xlu0 %1997, %v476
      %v1999 = vpop.permute.xlu0 %1998
      %2001 = vset.pattern.permute.xlu0 1
      %2002 = vperm.xlu0 %2001, %v477
      %v2003 = vpop.permute.xlu0 %2002
      %2005 = vset.pattern.permute.xlu0 1
      %2006 = vperm.xlu0 %2005, %v478
      %v2007 = vpop.permute.xlu0 %2006
      %2009 = vset.pattern.permute.xlu0 1
      %2010 = vperm.xlu0 %2009, %v479
      %v2011 = vpop.permute.xlu0 %2010
      %2013 = vset.pattern.permute.xlu0 1
      %2014 = vperm.xlu0 %2013, %v480
      %v2015 = vpop.permute.xlu0 %2014
      %2017 = vset.pattern.permute.xlu0 1
      %2018 = vperm.xlu0 %2017, %v481
      %v2019 = vpop.permute.xlu0 %2018
      %2021 = vset.pattern.permute.xlu0 1
      %2022 = vperm.xlu0 %2021, %v482
      %v2023 = vpop.permute.xlu0 %2022
      %2025 = vset.pattern.permute.xlu0 1
      %2026 = vperm.xlu0 %2025, %v483
      %v2027 = vpop.permute.xlu0 %2026
      %2029 = vset.pattern.permute.xlu0 1
      %2030 = vperm.xlu0 %2029, %v484
      %v2031 = vpop.permute.xlu0 %2030
      %2033 = vset.pattern.permute.xlu0 1
      %2034 = vperm.xlu0 %2033, %v485
      %v2035 = vpop.permute.xlu0 %2034
      %2037 = vset.pattern.permute.xlu0 1
      %2038 = vperm.xlu0 %2037, %v486
      %v2039 = vpop.permute.xlu0 %2038
      %2041 = vset.pattern.permute.xlu0 1
      %2042 = vperm.xlu0 %2041, %v487
      %v2043 = vpop.permute.xlu0 %2042
      %2045 = vset.pattern.permute.xlu0 1
      %2046 = vperm.xlu0 %2045, %v488
      %v2047 = vpop.permute.xlu0 %2046
      %2049 = vset.pattern.permute.xlu0 1
      %2050 = vperm.xlu0 %2049, %v489
      %v2051 = vpop.permute.xlu0 %2050
      %2053 = vset.pattern.permute.xlu0 1
      %2054 = vperm.xlu0 %2053, %v490
      %v2055 = vpop.permute.xlu0 %2054
      %2057 = vset.pattern.permute.xlu0 1
      %2058 = vperm.xlu0 %2057, %v491
      %v2059 = vpop.permute.xlu0 %2058
      %2061 = vset.pattern.permute.xlu0 1
      %2062 = vperm.xlu0 %2061, %v492
      %v2063 = vpop.permute.xlu0 %2062
      %2065 = vset.pattern.permute.xlu0 1
      %2066 = vperm.xlu0 %2065, %v493
      %v2067 = vpop.permute.xlu0 %2066
      %2069 = vset.pattern.permute.xlu0 1
      %2070 = vperm.xlu0 %2069, %v494
      %v2071 = vpop.permute.xlu0 %2070
      %2073 = vset.pattern.permute.xlu0 1
      %2074 = vperm.xlu0 %2073, %v495
      %v2075 = vpop.permute.xlu0 %2074
      %2077 = vset.pattern.permute.xlu0 1
      %2078 = vperm.xlu0 %2077, %v496
      %v2079 = vpop.permute.xlu0 %2078
      %2081 = vset.pattern.permute.xlu0 1
      %2082 = vperm.xlu0 %2081, %v497
      %v2083 = vpop.permute.xlu0 %2082
      %2085 = vset.pattern.permute.xlu0 1
      %2086 = vperm.xlu0 %2085, %v498
      %v2087 = vpop.permute.xlu0 %2086
      %2089 = vset.pattern.permute.xlu0 1
      %2090 = vperm.xlu0 %2089, %v499
      %v2091 = vpop.permute.xlu0 %2090
      %2093 = vset.pattern.permute.xlu0 1
      %2094 = vperm.xlu0 %2093, %v500
      %v2095 = vpop.permute.xlu0 %2094
      %2097 = vset.pattern.permute.xlu0 1
      %2098 = vperm.xlu0 %2097, %v501
      %v2099 = vpop.permute.xlu0 %2098
      %2101 = vset.pattern.permute.xlu0 1
      %2102 = vperm.xlu0 %2101, %v502
      %v2103 = vpop.permute.xlu0 %2102
      %2105 = vset.pattern.permute.xlu0 1
      %2106 = vperm.xlu0 %2105, %v503
      %v2107 = vpop.permute.xlu0 %2106
      %2109 = vset.pattern.permute.xlu0 1
      %2110 = vperm.xlu0 %2109, %v504
      %v2111 = vpop.permute.xlu0 %2110
      %2113 = vset.pattern.permute.xlu0 1
      %2114 = vperm.xlu0 %2113, %v505
      %v2115 = vpop.permute.xlu0 %2114
      %2117 = vset.pattern.permute.xlu0 1
      %2118 = vperm.xlu0 %2117, %v506
      %v2119 = vpop.permute.xlu0 %2118
      %2121 = vset.pattern.permute.xlu0 1
      %2122 = vperm.xlu0 %2121, %v507
      %v2123 = vpop.permute.xlu0 %2122
      %2125 = vset.pattern.permute.xlu0 1
      %2126 = vperm.xlu0 %2125, %v508
      %v2127 = vpop.permute.xlu0 %2126
      %2129 = vset.pattern.permute.xlu0 1
      %2130 = vperm.xlu0 %2129, %v509
      %v2131 = vpop.permute.xlu0 %2130
      %2133 = vset.pattern.permute.xlu0 1
      %2134 = vperm.xlu0 %2133, %v510
      %v2135 = vpop.permute.xlu0 %2134
      %2137 = vset.pattern.permute.xlu0 1
      %2138 = vperm.xlu0 %2137, %v511
      %v2139 = vpop.permute.xlu0 %2138
      %2141 = vset.pattern.permute.xlu0 1
      %2142 = vperm.xlu0 %2141, %v512
      %v2143 = vpop.permute.xlu0 %2142
      %2145 = vset.pattern.permute.xlu0 1
      %2146 = vperm.xlu0 %2145, %v513
      %v2147 = vpop.permute.xlu0 %2146
      %2149 = vset.pattern.permute.xlu0 1
      %2150 = vperm.xlu0 %2149, %v514
      %v2151 = vpop.permute.xlu0 %2150
      %2153 = vset.pattern.permute.xlu0 1
      %2154 = vperm.xlu0 %2153, %v515
      %v2155 = vpop.permute.xlu0 %2154
      %2157 = vset.pattern.permute.xlu0 1
      %2158 = vperm.xlu0 %2157, %v516
      %v2159 = vpop.permute.xlu0 %2158
      %2161 = vset.pattern.permute.xlu0 1
      %2162 = vperm.xlu0 %2161, %v517
      %v2163 = vpop.permute.xlu0 %2162
      %2165 = vset.pattern.permute.xlu0 1
      %2166 = vperm.xlu0 %2165, %v518
      %v2167 = vpop.permute.xlu0 %2166
      %2169 = vset.pattern.permute.xlu0 1
      %2170 = vperm.xlu0 %2169, %v519
      %v2171 = vpop.permute.xlu0 %2170
      %2173 = vset.pattern.permute.xlu0 1
      %2174 = vperm.xlu0 %2173, %v520
      %v2175 = vpop.permute.xlu0 %2174
      %2177 = vset.pattern.permute.xlu0 1
      %2178 = vperm.xlu0 %2177, %v521
      %v2179 = vpop.permute.xlu0 %2178
      %2181 = vset.pattern.permute.xlu0 1
      %2182 = vperm.xlu0 %2181, %v522
      %v2183 = vpop.permute.xlu0 %2182
      %2185 = vset.pattern.permute.xlu0 1
      %2186 = vperm.xlu0 %2185, %v523
      %v2187 = vpop.permute.xlu0 %2186
      %2189 = vset.pattern.permute.xlu0 1
      %2190 = vperm.xlu0 %2189, %v524
      %v2191 = vpop.permute.xlu0 %2190
      %2193 = vset.pattern.permute.xlu0 1
      %2194 = vperm.xlu0 %2193, %v525
      %v2195 = vpop.permute.xlu0 %2194
      %2197 = vset.pattern.permute.xlu0 1
      %2198 = vperm.xlu0 %2197, %v526
      %v2199 = vpop.permute.xlu0 %2198
      %2201 = vset.pattern.permute.xlu0 1
      %2202 = vperm.xlu0 %2201, %v527
      %v2203 = vpop.permute.xlu0 %2202
      %2205 = vset.pattern.permute.xlu0 1
      %2206 = vperm.xlu0 %2205, %v528
      %v2207 = vpop.permute.xlu0 %2206
      %2209 = vset.pattern.permute.xlu0 1
      %2210 = vperm.xlu0 %2209, %v529
      %v2211 = vpop.permute.xlu0 %2210
      %2213 = vset.pattern.permute.xlu0 1
      %2214 = vperm.xlu0 %2213, %v530
      %v2215 = vpop.permute.xlu0 %2214
      %2217 = vset.pattern.permute.xlu0 1
      %2218 = vperm.xlu0 %2217, %v531
      %v2219 = vpop.permute.xlu0 %2218
      %2221 = vset.pattern.permute.xlu0 1
      %2222 = vperm.xlu0 %2221, %v532
      %v2223 = vpop.permute.xlu0 %2222
      %2225 = vset.pattern.permute.xlu0 1
      %2226 = vperm.xlu0 %2225, %v533
      %v2227 = vpop.permute.xlu0 %2226
      %2229 = vset.pattern.permute.xlu0 1
      %2230 = vperm.xlu0 %2229, %v534
      %v2231 = vpop.permute.xlu0 %2230
      %2233 = vset.pattern.permute.xlu0 1
      %2234 = vperm.xlu0 %2233, %v535
      %v2235 = vpop.permute.xlu0 %2234
      %2237 = vset.pattern.permute.xlu0 1
      %2238 = vperm.xlu0 %2237, %v536
      %v2239 = vpop.permute.xlu0 %2238
      %2241 = vset.pattern.permute.xlu0 1
      %2242 = vperm.xlu0 %2241, %v537
      %v2243 = vpop.permute.xlu0 %2242
      %2245 = vset.pattern.permute.xlu0 1
      %2246 = vperm.xlu0 %2245, %v538
      %v2247 = vpop.permute.xlu0 %2246
      %2249 = vset.pattern.permute.xlu0 1
      %2250 = vperm.xlu0 %2249, %v539
      %v2251 = vpop.permute.xlu0 %2250
      %2253 = vset.pattern.permute.xlu0 1
      %2254 = vperm.xlu0 %2253, %v540
      %v2255 = vpop.permute.xlu0 %2254
      %2257 = vset.pattern.permute.xlu0 1
      %2258 = vperm.xlu0 %2257, %v541
      %v2259 = vpop.permute.xlu0 %2258
      %2261 = vset.pattern.permute.xlu0 1
      %2262 = vperm.xlu0 %2261, %v542
      %v2263 = vpop.permute.xlu0 %2262
      %2265 = vset.pattern.permute.xlu0 1
      %2266 = vperm.xlu0 %2265, %v543
      %v2267 = vpop.permute.xlu0 %2266
      %2269 = vset.pattern.permute.xlu0 1
      %2270 = vperm.xlu0 %2269, %v544
      %v2271 = vpop.permute.xlu0 %2270
      %2273 = vset.pattern.permute.xlu0 1
      %2274 = vperm.xlu0 %2273, %v545
      %v2275 = vpop.permute.xlu0 %2274
      %2277 = vset.pattern.permute.xlu0 1
      %2278 = vperm.xlu0 %2277, %v546
      %v2279 = vpop.permute.xlu0 %2278
      %2281 = vset.pattern.permute.xlu0 1
      %2282 = vperm.xlu0 %2281, %v547
      %v2283 = vpop.permute.xlu0 %2282
      %2285 = vset.pattern.permute.xlu0 1
      %2286 = vperm.xlu0 %2285, %v548
      %v2287 = vpop.permute.xlu0 %2286
      %2289 = vset.pattern.permute.xlu0 1
      %2290 = vperm.xlu0 %2289, %v549
      %v2291 = vpop.permute.xlu0 %2290
      %2293 = vset.pattern.permute.xlu0 1
      %2294 = vperm.xlu0 %2293, %v550
      %v2295 = vpop.permute.xlu0 %2294
      %2297 = vset.pattern.permute.xlu0 1
      %2298 = vperm.xlu0 %2297, %v551
      %v2299 = vpop.permute.xlu0 %2298
      %2301 = vset.pattern.permute.xlu0 1
      %2302 = vperm.xlu0 %2301, %v552
      %v2303 = vpop.permute.xlu0 %2302
      %2305 = vset.pattern.permute.xlu0 1
      %2306 = vperm.xlu0 %2305, %v553
      %v2307 = vpop.permute.xlu0 %2306
      %2309 = vset.pattern.permute.xlu0 1
      %2310 = vperm.xlu0 %2309, %v554
      %v2311 = vpop.permute.xlu0 %2310
      %2313 = vset.pattern.permute.xlu0 1
      %2314 = vperm.xlu0 %2313, %v555
      %v2315 = vpop.permute.xlu0 %2314
      %2317 = vset.pattern.permute.xlu0 1
      %2318 = vperm.xlu0 %2317, %v556
      %v2319 = vpop.permute.xlu0 %2318
      %2321 = vset.pattern.permute.xlu0 1
      %2322 = vperm.xlu0 %2321, %v557
      %v2323 = vpop.permute.xlu0 %2322
      %2325 = vset.pattern.permute.xlu0 1
      %2326 = vperm.xlu0 %2325, %v558
      %v2327 = vpop.permute.xlu0 %2326
      %2329 = vset.pattern.permute.xlu0 1
      %2330 = vperm.xlu0 %2329, %v559
      %v2331 = vpop.permute.xlu0 %2330
      %2333 = vset.pattern.permute.xlu0 1
      %2334 = vperm.xlu0 %2333, %v560
      %v2335 = vpop.permute.xlu0 %2334
      %2337 = vset.pattern.permute.xlu0 1
      %2338 = vperm.xlu0 %2337, %v561
      %v2339 = vpop.permute.xlu0 %2338
      %2341 = vset.pattern.permute.xlu0 1
      %2342 = vperm.xlu0 %2341, %v562
      %v2343 = vpop.permute.xlu0 %2342
      %2345 = vset.pattern.permute.xlu0 1
      %2346 = vperm.xlu0 %2345, %v563
      %v2347 = vpop.permute.xlu0 %2346
      %2349 = vset.pattern.permute.xlu0 1
      %2350 = vperm.xlu0 %2349, %v564
      %v2351 = vpop.permute.xlu0 %2350
      %2353 = vset.pattern.permute.xlu0 1
      %2354 = vperm.xlu0 %2353, %v565
      %v2355 = vpop.permute.xlu0 %2354
      %2357 = vset.pattern.permute.xlu0 1
      %2358 = vperm.xlu0 %2357, %v566
      %v2359 = vpop.permute.xlu0 %2358
      %2361 = vset.pattern.permute.xlu0 1
      %2362 = vperm.xlu0 %2361, %v567
      %v2363 = vpop.permute.xlu0 %2362
      %2365 = vset.pattern.permute.xlu0 1
      %2366 = vperm.xlu0 %2365, %v568
      %v2367 = vpop.permute.xlu0 %2366
      %2369 = vset.pattern.permute.xlu0 1
      %2370 = vperm.xlu0 %2369, %v569
      %v2371 = vpop.permute.xlu0 %2370
      %2373 = vset.pattern.permute.xlu0 1
      %2374 = vperm.xlu0 %2373, %v570
      %v2375 = vpop.permute.xlu0 %2374
      %2377 = vset.pattern.permute.xlu0 1
      %2378 = vperm.xlu0 %2377, %v571
      %v2379 = vpop.permute.xlu0 %2378
      %v2381 = vperm.slane %v1868, 0
      %v2382 = vmul.f32 %v1871, %v2381
      %v2383 = vmul.f32 %v1875, %v2381
      %v2384 = vmul.f32 %v1879, %v2381
      %v2385 = vmul.f32 %v1883, %v2381
      %v2386 = vmul.f32 %v1887, %v2381
      %v2387 = vmul.f32 %v1891, %v2381
      %v2388 = vmul.f32 %v1895, %v2381
      %v2389 = vmul.f32 %v1899, %v2381
      %v2390 = vmul.f32 %v1903, %v2381
      %v2391 = vmul.f32 %v1907, %v2381
      %v2392 = vmul.f32 %v1911, %v2381
      %v2393 = vmul.f32 %v1915, %v2381
      %v2394 = vmul.f32 %v1919, %v2381
      %v2395 = vmul.f32 %v1923, %v2381
      %v2396 = vmul.f32 %v1927, %v2381
      %v2397 = vmul.f32 %v1931, %v2381
      %v2398 = vmul.f32 %v1935, %v2381
      %v2399 = vmul.f32 %v1939, %v2381
      %v2400 = vmul.f32 %v1943, %v2381
      %v2401 = vmul.f32 %v1947, %v2381
      %v2402 = vmul.f32 %v1951, %v2381
      %v2403 = vmul.f32 %v1955, %v2381
      %v2404 = vmul.f32 %v1959, %v2381
      %v2405 = vmul.f32 %v1963, %v2381
      %v2406 = vmul.f32 %v1967, %v2381
      %v2407 = vmul.f32 %v1971, %v2381
      %v2408 = vmul.f32 %v1975, %v2381
      %v2409 = vmul.f32 %v1979, %v2381
      %v2410 = vmul.f32 %v1983, %v2381
      %v2411 = vmul.f32 %v1987, %v2381
      %v2412 = vmul.f32 %v1991, %v2381
      %v2413 = vmul.f32 %v1995, %v2381
      %v2414 = vmul.f32 %v1999, %v2381
      %v2415 = vmul.f32 %v2003, %v2381
      %v2416 = vmul.f32 %v2007, %v2381
      %v2417 = vmul.f32 %v2011, %v2381
      %v2418 = vmul.f32 %v2015, %v2381
      %v2419 = vmul.f32 %v2019, %v2381
      %v2420 = vmul.f32 %v2023, %v2381
      %v2421 = vmul.f32 %v2027, %v2381
      %v2422 = vmul.f32 %v2031, %v2381
      %v2423 = vmul.f32 %v2035, %v2381
      %v2424 = vmul.f32 %v2039, %v2381
      %v2425 = vmul.f32 %v2043, %v2381
      %v2426 = vmul.f32 %v2047, %v2381
      %v2427 = vmul.f32 %v2051, %v2381
      %v2428 = vmul.f32 %v2055, %v2381
      %v2429 = vmul.f32 %v2059, %v2381
      %v2430 = vmul.f32 %v2063, %v2381
      %v2431 = vmul.f32 %v2067, %v2381
      %v2432 = vmul.f32 %v2071, %v2381
      %v2433 = vmul.f32 %v2075, %v2381
      %v2434 = vmul.f32 %v2079, %v2381
      %v2435 = vmul.f32 %v2083, %v2381
      %v2436 = vmul.f32 %v2087, %v2381
      %v2437 = vmul.f32 %v2091, %v2381
      %v2438 = vmul.f32 %v2095, %v2381
      %v2439 = vmul.f32 %v2099, %v2381
      %v2440 = vmul.f32 %v2103, %v2381
      %v2441 = vmul.f32 %v2107, %v2381
      %v2442 = vmul.f32 %v2111, %v2381
      %v2443 = vmul.f32 %v2115, %v2381
      %v2444 = vmul.f32 %v2119, %v2381
      %v2445 = vmul.f32 %v2123, %v2381
      %v2446 = vmul.f32 %v2127, %v2381
      %v2447 = vmul.f32 %v2131, %v2381
      %v2448 = vmul.f32 %v2135, %v2381
      %v2449 = vmul.f32 %v2139, %v2381
      %v2450 = vmul.f32 %v2143, %v2381
      %v2451 = vmul.f32 %v2147, %v2381
      %v2452 = vmul.f32 %v2151, %v2381
      %v2453 = vmul.f32 %v2155, %v2381
      %v2454 = vmul.f32 %v2159, %v2381
      %v2455 = vmul.f32 %v2163, %v2381
      %v2456 = vmul.f32 %v2167, %v2381
      %v2457 = vmul.f32 %v2171, %v2381
      %v2458 = vmul.f32 %v2175, %v2381
      %v2459 = vmul.f32 %v2179, %v2381
      %v2460 = vmul.f32 %v2183, %v2381
      %v2461 = vmul.f32 %v2187, %v2381
      %v2462 = vmul.f32 %v2191, %v2381
      %v2463 = vmul.f32 %v2195, %v2381
      %v2464 = vmul.f32 %v2199, %v2381
      %v2465 = vmul.f32 %v2203, %v2381
      %v2466 = vmul.f32 %v2207, %v2381
      %v2467 = vmul.f32 %v2211, %v2381
      %v2468 = vmul.f32 %v2215, %v2381
      %v2469 = vmul.f32 %v2219, %v2381
      %v2470 = vmul.f32 %v2223, %v2381
      %v2471 = vmul.f32 %v2227, %v2381
      %v2472 = vmul.f32 %v2231, %v2381
      %v2473 = vmul.f32 %v2235, %v2381
      %v2474 = vmul.f32 %v2239, %v2381
      %v2475 = vmul.f32 %v2243, %v2381
      %v2476 = vmul.f32 %v2247, %v2381
      %v2477 = vmul.f32 %v2251, %v2381
      %v2478 = vmul.f32 %v2255, %v2381
      %v2479 = vmul.f32 %v2259, %v2381
      %v2480 = vmul.f32 %v2263, %v2381
      %v2481 = vmul.f32 %v2267, %v2381
      %v2482 = vmul.f32 %v2271, %v2381
      %v2483 = vmul.f32 %v2275, %v2381
      %v2484 = vmul.f32 %v2279, %v2381
      %v2485 = vmul.f32 %v2283, %v2381
      %v2486 = vmul.f32 %v2287, %v2381
      %v2487 = vmul.f32 %v2291, %v2381
      %v2488 = vmul.f32 %v2295, %v2381
      %v2489 = vmul.f32 %v2299, %v2381
      %v2490 = vmul.f32 %v2303, %v2381
      %v2491 = vmul.f32 %v2307, %v2381
      %v2492 = vmul.f32 %v2311, %v2381
      %v2493 = vmul.f32 %v2315, %v2381
      %v2494 = vmul.f32 %v2319, %v2381
      %v2495 = vmul.f32 %v2323, %v2381
      %v2496 = vmul.f32 %v2327, %v2381
      %v2497 = vmul.f32 %v2331, %v2381
      %v2498 = vmul.f32 %v2335, %v2381
      %v2499 = vmul.f32 %v2339, %v2381
      %v2500 = vmul.f32 %v2343, %v2381
      %v2501 = vmul.f32 %v2347, %v2381
      %v2502 = vmul.f32 %v2351, %v2381
      %v2503 = vmul.f32 %v2355, %v2381
      %v2504 = vmul.f32 %v2359, %v2381
      %v2505 = vmul.f32 %v2363, %v2381
      %v2506 = vmul.f32 %v2367, %v2381
      %v2507 = vmul.f32 %v2371, %v2381
      %v2508 = vmul.f32 %v2375, %v2381
      %v2509 = vmul.f32 %v2379, %v2381
      %v2510 = vadd.f32 %v1549, %v2382
      %v2511 = vadd.f32 %v1551, %v2383
      %v2512 = vadd.f32 %v1554, %v2384
      %v2513 = vadd.f32 %v1556, %v2385
      %v2514 = vadd.f32 %v1559, %v2386
      %v2515 = vadd.f32 %v1561, %v2387
      %v2516 = vadd.f32 %v1564, %v2388
      %v2517 = vadd.f32 %v1566, %v2389
      %v2518 = vadd.f32 %v1569, %v2390
      %v2519 = vadd.f32 %v1571, %v2391
      %v2520 = vadd.f32 %v1574, %v2392
      %v2521 = vadd.f32 %v1576, %v2393
      %v2522 = vadd.f32 %v1579, %v2394
      %v2523 = vadd.f32 %v1581, %v2395
      %v2524 = vadd.f32 %v1584, %v2396
      %v2525 = vadd.f32 %v1586, %v2397
      %v2526 = vadd.f32 %v1589, %v2398
      %v2527 = vadd.f32 %v1591, %v2399
      %v2528 = vadd.f32 %v1594, %v2400
      %v2529 = vadd.f32 %v1596, %v2401
      %v2530 = vadd.f32 %v1599, %v2402
      %v2531 = vadd.f32 %v1601, %v2403
      %v2532 = vadd.f32 %v1604, %v2404
      %v2533 = vadd.f32 %v1606, %v2405
      %v2534 = vadd.f32 %v1609, %v2406
      %v2535 = vadd.f32 %v1611, %v2407
      %v2536 = vadd.f32 %v1614, %v2408
      %v2537 = vadd.f32 %v1616, %v2409
      %v2538 = vadd.f32 %v1619, %v2410
      %v2539 = vadd.f32 %v1621, %v2411
      %v2540 = vadd.f32 %v1624, %v2412
      %v2541 = vadd.f32 %v1626, %v2413
      %v2542 = vadd.f32 %v1629, %v2414
      %v2543 = vadd.f32 %v1631, %v2415
      %v2544 = vadd.f32 %v1634, %v2416
      %v2545 = vadd.f32 %v1636, %v2417
      %v2546 = vadd.f32 %v1639, %v2418
      %v2547 = vadd.f32 %v1641, %v2419
      %v2548 = vadd.f32 %v1644, %v2420
      %v2549 = vadd.f32 %v1646, %v2421
      %v2550 = vadd.f32 %v1649, %v2422
      %v2551 = vadd.f32 %v1651, %v2423
      %v2552 = vadd.f32 %v1654, %v2424
      %v2553 = vadd.f32 %v1656, %v2425
      %v2554 = vadd.f32 %v1659, %v2426
      %v2555 = vadd.f32 %v1661, %v2427
      %v2556 = vadd.f32 %v1664, %v2428
      %v2557 = vadd.f32 %v1666, %v2429
      %v2558 = vadd.f32 %v1669, %v2430
      %v2559 = vadd.f32 %v1671, %v2431
      %v2560 = vadd.f32 %v1674, %v2432
      %v2561 = vadd.f32 %v1676, %v2433
      %v2562 = vadd.f32 %v1679, %v2434
      %v2563 = vadd.f32 %v1681, %v2435
      %v2564 = vadd.f32 %v1684, %v2436
      %v2565 = vadd.f32 %v1686, %v2437
      %v2566 = vadd.f32 %v1689, %v2438
      %v2567 = vadd.f32 %v1691, %v2439
      %v2568 = vadd.f32 %v1694, %v2440
      %v2569 = vadd.f32 %v1696, %v2441
      %v2570 = vadd.f32 %v1699, %v2442
      %v2571 = vadd.f32 %v1701, %v2443
      %v2572 = vadd.f32 %v1704, %v2444
      %v2573 = vadd.f32 %v1706, %v2445
      %v2574 = vadd.f32 %v1709, %v2446
      %v2575 = vadd.f32 %v1711, %v2447
      %v2576 = vadd.f32 %v1714, %v2448
      %v2577 = vadd.f32 %v1716, %v2449
      %v2578 = vadd.f32 %v1719, %v2450
      %v2579 = vadd.f32 %v1721, %v2451
      %v2580 = vadd.f32 %v1724, %v2452
      %v2581 = vadd.f32 %v1726, %v2453
      %v2582 = vadd.f32 %v1729, %v2454
      %v2583 = vadd.f32 %v1731, %v2455
      %v2584 = vadd.f32 %v1734, %v2456
      %v2585 = vadd.f32 %v1736, %v2457
      %v2586 = vadd.f32 %v1739, %v2458
      %v2587 = vadd.f32 %v1741, %v2459
      %v2588 = vadd.f32 %v1744, %v2460
      %v2589 = vadd.f32 %v1746, %v2461
      %v2590 = vadd.f32 %v1749, %v2462
      %v2591 = vadd.f32 %v1751, %v2463
      %v2592 = vadd.f32 %v1754, %v2464
      %v2593 = vadd.f32 %v1756, %v2465
      %v2594 = vadd.f32 %v1759, %v2466
      %v2595 = vadd.f32 %v1761, %v2467
      %v2596 = vadd.f32 %v1764, %v2468
      %v2597 = vadd.f32 %v1766, %v2469
      %v2598 = vadd.f32 %v1769, %v2470
      %v2599 = vadd.f32 %v1771, %v2471
      %v2600 = vadd.f32 %v1774, %v2472
      %v2601 = vadd.f32 %v1776, %v2473
      %v2602 = vadd.f32 %v1779, %v2474
      %v2603 = vadd.f32 %v1781, %v2475
      %v2604 = vadd.f32 %v1784, %v2476
      %v2605 = vadd.f32 %v1786, %v2477
      %v2606 = vadd.f32 %v1789, %v2478
      %v2607 = vadd.f32 %v1791, %v2479
      %v2608 = vadd.f32 %v1794, %v2480
      %v2609 = vadd.f32 %v1796, %v2481
      %v2610 = vadd.f32 %v1799, %v2482
      %v2611 = vadd.f32 %v1801, %v2483
      %v2612 = vadd.f32 %v1804, %v2484
      %v2613 = vadd.f32 %v1806, %v2485
      %v2614 = vadd.f32 %v1809, %v2486
      %v2615 = vadd.f32 %v1811, %v2487
      %v2616 = vadd.f32 %v1814, %v2488
      %v2617 = vadd.f32 %v1816, %v2489
      %v2618 = vadd.f32 %v1819, %v2490
      %v2619 = vadd.f32 %v1821, %v2491
      %v2620 = vadd.f32 %v1824, %v2492
      %v2621 = vadd.f32 %v1826, %v2493
      %v2622 = vadd.f32 %v1829, %v2494
      %v2623 = vadd.f32 %v1831, %v2495
      %v2624 = vadd.f32 %v1834, %v2496
      %v2625 = vadd.f32 %v1836, %v2497
      %v2626 = vadd.f32 %v1839, %v2498
      %v2627 = vadd.f32 %v1841, %v2499
      %v2628 = vadd.f32 %v1844, %v2500
      %v2629 = vadd.f32 %v1846, %v2501
      %v2630 = vadd.f32 %v1849, %v2502
      %v2631 = vadd.f32 %v1851, %v2503
      %v2632 = vadd.f32 %v1854, %v2504
      %v2633 = vadd.f32 %v1856, %v2505
      %v2634 = vadd.f32 %v1859, %v2506
      %v2635 = vadd.f32 %v1861, %v2507
      %v2636 = vadd.f32 %v1864, %v2508
      %v2637 = vadd.f32 %v1866, %v2509
      %v2638 = vld [vmem:[%s4] sm:$0x1]
      %v2640 = vperm.slane %v2638, 0
      %v2642 = vadd.f32 %v2510, %v2640
      %v2643 = vadd.f32 %v2511, %v2640
      %v2644 = vadd.f32 %v2512, %v2640
      %v2645 = vadd.f32 %v2513, %v2640
      %v2646 = vadd.f32 %v2514, %v2640
      %v2647 = vadd.f32 %v2515, %v2640
      %v2648 = vadd.f32 %v2516, %v2640
      %v2649 = vadd.f32 %v2517, %v2640
      %v2650 = vadd.f32 %v2518, %v2640
      %v2651 = vadd.f32 %v2519, %v2640
      %v2652 = vadd.f32 %v2520, %v2640
      %v2653 = vadd.f32 %v2521, %v2640
      %v2654 = vadd.f32 %v2522, %v2640
      %v2655 = vadd.f32 %v2523, %v2640
      %v2656 = vadd.f32 %v2524, %v2640
      %v2657 = vadd.f32 %v2525, %v2640
      %v2658 = vadd.f32 %v2526, %v2640
      %v2659 = vadd.f32 %v2527, %v2640
      %v2660 = vadd.f32 %v2528, %v2640
      %v2661 = vadd.f32 %v2529, %v2640
      %v2662 = vadd.f32 %v2530, %v2640
      %v2663 = vadd.f32 %v2531, %v2640
      %v2664 = vadd.f32 %v2532, %v2640
      %v2665 = vadd.f32 %v2533, %v2640
      %v2666 = vadd.f32 %v2534, %v2640
      %v2667 = vadd.f32 %v2535, %v2640
      %v2668 = vadd.f32 %v2536, %v2640
      %v2669 = vadd.f32 %v2537, %v2640
      %v2670 = vadd.f32 %v2538, %v2640
      %v2671 = vadd.f32 %v2539, %v2640
      %v2672 = vadd.f32 %v2540, %v2640
      %v2673 = vadd.f32 %v2541, %v2640
      %v2674 = vadd.f32 %v2542, %v2640
      %v2675 = vadd.f32 %v2543, %v2640
      %v2676 = vadd.f32 %v2544, %v2640
      %v2677 = vadd.f32 %v2545, %v2640
      %v2678 = vadd.f32 %v2546, %v2640
      %v2679 = vadd.f32 %v2547, %v2640
      %v2680 = vadd.f32 %v2548, %v2640
      %v2681 = vadd.f32 %v2549, %v2640
      %v2682 = vadd.f32 %v2550, %v2640
      %v2683 = vadd.f32 %v2551, %v2640
      %v2684 = vadd.f32 %v2552, %v2640
      %v2685 = vadd.f32 %v2553, %v2640
      %v2686 = vadd.f32 %v2554, %v2640
      %v2687 = vadd.f32 %v2555, %v2640
      %v2688 = vadd.f32 %v2556, %v2640
      %v2689 = vadd.f32 %v2557, %v2640
      %v2690 = vadd.f32 %v2558, %v2640
      %v2691 = vadd.f32 %v2559, %v2640
      %v2692 = vadd.f32 %v2560, %v2640
      %v2693 = vadd.f32 %v2561, %v2640
      %v2694 = vadd.f32 %v2562, %v2640
      %v2695 = vadd.f32 %v2563, %v2640
      %v2696 = vadd.f32 %v2564, %v2640
      %v2697 = vadd.f32 %v2565, %v2640
      %v2698 = vadd.f32 %v2566, %v2640
      %v2699 = vadd.f32 %v2567, %v2640
      %v2700 = vadd.f32 %v2568, %v2640
      %v2701 = vadd.f32 %v2569, %v2640
      %v2702 = vadd.f32 %v2570, %v2640
      %v2703 = vadd.f32 %v2571, %v2640
      %v2704 = vadd.f32 %v2572, %v2640
      %v2705 = vadd.f32 %v2573, %v2640
      %v2706 = vadd.f32 %v2574, %v2640
      %v2707 = vadd.f32 %v2575, %v2640
      %v2708 = vadd.f32 %v2576, %v2640
      %v2709 = vadd.f32 %v2577, %v2640
      %v2710 = vadd.f32 %v2578, %v2640
      %v2711 = vadd.f32 %v2579, %v2640
      %v2712 = vadd.f32 %v2580, %v2640
      %v2713 = vadd.f32 %v2581, %v2640
      %v2714 = vadd.f32 %v2582, %v2640
      %v2715 = vadd.f32 %v2583, %v2640
      %v2716 = vadd.f32 %v2584, %v2640
      %v2717 = vadd.f32 %v2585, %v2640
      %v2718 = vadd.f32 %v2586, %v2640
      %v2719 = vadd.f32 %v2587, %v2640
      %v2720 = vadd.f32 %v2588, %v2640
      %v2721 = vadd.f32 %v2589, %v2640
      %v2722 = vadd.f32 %v2590, %v2640
      %v2723 = vadd.f32 %v2591, %v2640
      %v2724 = vadd.f32 %v2592, %v2640
      %v2725 = vadd.f32 %v2593, %v2640
      %v2726 = vadd.f32 %v2594, %v2640
      %v2727 = vadd.f32 %v2595, %v2640
      %v2728 = vadd.f32 %v2596, %v2640
      %v2729 = vadd.f32 %v2597, %v2640
      %v2730 = vadd.f32 %v2598, %v2640
      %v2731 = vadd.f32 %v2599, %v2640
      %v2732 = vadd.f32 %v2600, %v2640
      %v2733 = vadd.f32 %v2601, %v2640
      %v2734 = vadd.f32 %v2602, %v2640
      %v2735 = vadd.f32 %v2603, %v2640
      %v2736 = vadd.f32 %v2604, %v2640
      %v2737 = vadd.f32 %v2605, %v2640
      %v2738 = vadd.f32 %v2606, %v2640
      %v2739 = vadd.f32 %v2607, %v2640
      %v2740 = vadd.f32 %v2608, %v2640
      %v2741 = vadd.f32 %v2609, %v2640
      %v2742 = vadd.f32 %v2610, %v2640
      %v2743 = vadd.f32 %v2611, %v2640
      %v2744 = vadd.f32 %v2612, %v2640
      %v2745 = vadd.f32 %v2613, %v2640
      %v2746 = vadd.f32 %v2614, %v2640
      %v2747 = vadd.f32 %v2615, %v2640
      %v2748 = vadd.f32 %v2616, %v2640
      %v2749 = vadd.f32 %v2617, %v2640
      %v2750 = vadd.f32 %v2618, %v2640
      %v2751 = vadd.f32 %v2619, %v2640
      %v2752 = vadd.f32 %v2620, %v2640
      %v2753 = vadd.f32 %v2621, %v2640
      %v2754 = vadd.f32 %v2622, %v2640
      %v2755 = vadd.f32 %v2623, %v2640
      %v2756 = vadd.f32 %v2624, %v2640
      %v2757 = vadd.f32 %v2625, %v2640
      %v2758 = vadd.f32 %v2626, %v2640
      %v2759 = vadd.f32 %v2627, %v2640
      %v2760 = vadd.f32 %v2628, %v2640
      %v2761 = vadd.f32 %v2629, %v2640
      %v2762 = vadd.f32 %v2630, %v2640
      %v2763 = vadd.f32 %v2631, %v2640
      %v2764 = vadd.f32 %v2632, %v2640
      %v2765 = vadd.f32 %v2633, %v2640
      %v2766 = vadd.f32 %v2634, %v2640
      %v2767 = vadd.f32 %v2635, %v2640
      %v2768 = vadd.f32 %v2636, %v2640
      %v2769 = vadd.f32 %v2637, %v2640
      %v2770 = vmax.f32 %v2642, 0.0
      %v2771 = vmax.f32 %v2643, 0.0
      %v2772 = vmax.f32 %v2644, 0.0
      %v2773 = vmax.f32 %v2645, 0.0
      %v2774 = vmax.f32 %v2646, 0.0
      %v2775 = vmax.f32 %v2647, 0.0
      %v2776 = vmax.f32 %v2648, 0.0
      %v2777 = vmax.f32 %v2649, 0.0
      %v2778 = vmax.f32 %v2650, 0.0
      %v2779 = vmax.f32 %v2651, 0.0
      %v2780 = vmax.f32 %v2652, 0.0
      %v2781 = vmax.f32 %v2653, 0.0
      %v2782 = vmax.f32 %v2654, 0.0
      %v2783 = vmax.f32 %v2655, 0.0
      %v2784 = vmax.f32 %v2656, 0.0
      %v2785 = vmax.f32 %v2657, 0.0
      %v2786 = vmax.f32 %v2658, 0.0
      %v2787 = vmax.f32 %v2659, 0.0
      %v2788 = vmax.f32 %v2660, 0.0
      %v2789 = vmax.f32 %v2661, 0.0
      %v2790 = vmax.f32 %v2662, 0.0
      %v2791 = vmax.f32 %v2663, 0.0
      %v2792 = vmax.f32 %v2664, 0.0
      %v2793 = vmax.f32 %v2665, 0.0
      %v2794 = vmax.f32 %v2666, 0.0
      %v2795 = vmax.f32 %v2667, 0.0
      %v2796 = vmax.f32 %v2668, 0.0
      %v2797 = vmax.f32 %v2669, 0.0
      %v2798 = vmax.f32 %v2670, 0.0
      %v2799 = vmax.f32 %v2671, 0.0
      %v2800 = vmax.f32 %v2672, 0.0
      %v2801 = vmax.f32 %v2673, 0.0
      %v2802 = vmax.f32 %v2674, 0.0
      %v2803 = vmax.f32 %v2675, 0.0
      %v2804 = vmax.f32 %v2676, 0.0
      %v2805 = vmax.f32 %v2677, 0.0
      %v2806 = vmax.f32 %v2678, 0.0
      %v2807 = vmax.f32 %v2679, 0.0
      %v2808 = vmax.f32 %v2680, 0.0
      %v2809 = vmax.f32 %v2681, 0.0
      %v2810 = vmax.f32 %v2682, 0.0
      %v2811 = vmax.f32 %v2683, 0.0
      %v2812 = vmax.f32 %v2684, 0.0
      %v2813 = vmax.f32 %v2685, 0.0
      %v2814 = vmax.f32 %v2686, 0.0
      %v2815 = vmax.f32 %v2687, 0.0
      %v2816 = vmax.f32 %v2688, 0.0
      %v2817 = vmax.f32 %v2689, 0.0
      %v2818 = vmax.f32 %v2690, 0.0
      %v2819 = vmax.f32 %v2691, 0.0
      %v2820 = vmax.f32 %v2692, 0.0
      %v2821 = vmax.f32 %v2693, 0.0
      %v2822 = vmax.f32 %v2694, 0.0
      %v2823 = vmax.f32 %v2695, 0.0
      %v2824 = vmax.f32 %v2696, 0.0
      %v2825 = vmax.f32 %v2697, 0.0
      %v2826 = vmax.f32 %v2698, 0.0
      %v2827 = vmax.f32 %v2699, 0.0
      %v2828 = vmax.f32 %v2700, 0.0
      %v2829 = vmax.f32 %v2701, 0.0
      %v2830 = vmax.f32 %v2702, 0.0
      %v2831 = vmax.f32 %v2703, 0.0
      %v2832 = vmax.f32 %v2704, 0.0
      %v2833 = vmax.f32 %v2705, 0.0
      %v2834 = vmax.f32 %v2706, 0.0
      %v2835 = vmax.f32 %v2707, 0.0
      %v2836 = vmax.f32 %v2708, 0.0
      %v2837 = vmax.f32 %v2709, 0.0
      %v2838 = vmax.f32 %v2710, 0.0
      %v2839 = vmax.f32 %v2711, 0.0
      %v2840 = vmax.f32 %v2712, 0.0
      %v2841 = vmax.f32 %v2713, 0.0
      %v2842 = vmax.f32 %v2714, 0.0
      %v2843 = vmax.f32 %v2715, 0.0
      %v2844 = vmax.f32 %v2716, 0.0
      %v2845 = vmax.f32 %v2717, 0.0
      %v2846 = vmax.f32 %v2718, 0.0
      %v2847 = vmax.f32 %v2719, 0.0
      %v2848 = vmax.f32 %v2720, 0.0
      %v2849 = vmax.f32 %v2721, 0.0
      %v2850 = vmax.f32 %v2722, 0.0
      %v2851 = vmax.f32 %v2723, 0.0
      %v2852 = vmax.f32 %v2724, 0.0
      %v2853 = vmax.f32 %v2725, 0.0
      %v2854 = vmax.f32 %v2726, 0.0
      %v2855 = vmax.f32 %v2727, 0.0
      %v2856 = vmax.f32 %v2728, 0.0
      %v2857 = vmax.f32 %v2729, 0.0
      %v2858 = vmax.f32 %v2730, 0.0
      %v2859 = vmax.f32 %v2731, 0.0
      %v2860 = vmax.f32 %v2732, 0.0
      %v2861 = vmax.f32 %v2733, 0.0
      %v2862 = vmax.f32 %v2734, 0.0
      %v2863 = vmax.f32 %v2735, 0.0
      %v2864 = vmax.f32 %v2736, 0.0
      %v2865 = vmax.f32 %v2737, 0.0
      %v2866 = vmax.f32 %v2738, 0.0
      %v2867 = vmax.f32 %v2739, 0.0
      %v2868 = vmax.f32 %v2740, 0.0
      %v2869 = vmax.f32 %v2741, 0.0
      %v2870 = vmax.f32 %v2742, 0.0
      %v2871 = vmax.f32 %v2743, 0.0
      %v2872 = vmax.f32 %v2744, 0.0
      %v2873 = vmax.f32 %v2745, 0.0
      %v2874 = vmax.f32 %v2746, 0.0
      %v2875 = vmax.f32 %v2747, 0.0
      %v2876 = vmax.f32 %v2748, 0.0
      %v2877 = vmax.f32 %v2749, 0.0
      %v2878 = vmax.f32 %v2750, 0.0
      %v2879 = vmax.f32 %v2751, 0.0
      %v2880 = vmax.f32 %v2752, 0.0
      %v2881 = vmax.f32 %v2753, 0.0
      %v2882 = vmax.f32 %v2754, 0.0
      %v2883 = vmax.f32 %v2755, 0.0
      %v2884 = vmax.f32 %v2756, 0.0
      %v2885 = vmax.f32 %v2757, 0.0
      %v2886 = vmax.f32 %v2758, 0.0
      %v2887 = vmax.f32 %v2759, 0.0
      %v2888 = vmax.f32 %v2760, 0.0
      %v2889 = vmax.f32 %v2761, 0.0
      %v2890 = vmax.f32 %v2762, 0.0
      %v2891 = vmax.f32 %v2763, 0.0
      %v2892 = vmax.f32 %v2764, 0.0
      %v2893 = vmax.f32 %v2765, 0.0
      %v2894 = vmax.f32 %v2766, 0.0
      %v2895 = vmax.f32 %v2767, 0.0
      %v2896 = vmax.f32 %v2768, 0.0
      %v2897 = vmax.f32 %v2769, 0.0
      %v2898 = vpack.c.bf16 %v2770, %v2770
      %v2899 = vpack.c.bf16 %v2771, %v2771
      %v2900 = vpack.c.bf16 %v2772, %v2772
      %v2901 = vpack.c.bf16 %v2773, %v2773
      %v2902 = vpack.c.bf16 %v2774, %v2774
      %v2903 = vpack.c.bf16 %v2775, %v2775
      %v2904 = vpack.c.bf16 %v2776, %v2776
      %v2905 = vpack.c.bf16 %v2777, %v2777
      %v2906 = vpack.c.bf16 %v2778, %v2778
      %v2907 = vpack.c.bf16 %v2779, %v2779
      %v2908 = vpack.c.bf16 %v2780, %v2780
      %v2909 = vpack.c.bf16 %v2781, %v2781
      %v2910 = vpack.c.bf16 %v2782, %v2782
      %v2911 = vpack.c.bf16 %v2783, %v2783
      %v2912 = vpack.c.bf16 %v2784, %v2784
      %v2913 = vpack.c.bf16 %v2785, %v2785
      %v2914 = vpack.c.bf16 %v2786, %v2786
      %v2915 = vpack.c.bf16 %v2787, %v2787
      %v2916 = vpack.c.bf16 %v2788, %v2788
      %v2917 = vpack.c.bf16 %v2789, %v2789
      %v2918 = vpack.c.bf16 %v2790, %v2790
      %v2919 = vpack.c.bf16 %v2791, %v2791
      %v2920 = vpack.c.bf16 %v2792, %v2792
      %v2921 = vpack.c.bf16 %v2793, %v2793
      %v2922 = vpack.c.bf16 %v2794, %v2794
      %v2923 = vpack.c.bf16 %v2795, %v2795
      %v2924 = vpack.c.bf16 %v2796, %v2796
      %v2925 = vpack.c.bf16 %v2797, %v2797
      %v2926 = vpack.c.bf16 %v2798, %v2798
      %v2927 = vpack.c.bf16 %v2799, %v2799
      %v2928 = vpack.c.bf16 %v2800, %v2800
      %v2929 = vpack.c.bf16 %v2801, %v2801
      %v2930 = vpack.c.bf16 %v2802, %v2802
      %v2931 = vpack.c.bf16 %v2803, %v2803
      %v2932 = vpack.c.bf16 %v2804, %v2804
      %v2933 = vpack.c.bf16 %v2805, %v2805
      %v2934 = vpack.c.bf16 %v2806, %v2806
      %v2935 = vpack.c.bf16 %v2807, %v2807
      %v2936 = vpack.c.bf16 %v2808, %v2808
      %v2937 = vpack.c.bf16 %v2809, %v2809
      %v2938 = vpack.c.bf16 %v2810, %v2810
      %v2939 = vpack.c.bf16 %v2811, %v2811
      %v2940 = vpack.c.bf16 %v2812, %v2812
      %v2941 = vpack.c.bf16 %v2813, %v2813
      %v2942 = vpack.c.bf16 %v2814, %v2814
      %v2943 = vpack.c.bf16 %v2815, %v2815
      %v2944 = vpack.c.bf16 %v2816, %v2816
      %v2945 = vpack.c.bf16 %v2817, %v2817
      %v2946 = vpack.c.bf16 %v2818, %v2818
      %v2947 = vpack.c.bf16 %v2819, %v2819
      %v2948 = vpack.c.bf16 %v2820, %v2820
      %v2949 = vpack.c.bf16 %v2821, %v2821
      %v2950 = vpack.c.bf16 %v2822, %v2822
      %v2951 = vpack.c.bf16 %v2823, %v2823
      %v2952 = vpack.c.bf16 %v2824, %v2824
      %v2953 = vpack.c.bf16 %v2825, %v2825
      %v2954 = vpack.c.bf16 %v2826, %v2826
      %v2955 = vpack.c.bf16 %v2827, %v2827
      %v2956 = vpack.c.bf16 %v2828, %v2828
      %v2957 = vpack.c.bf16 %v2829, %v2829
      %v2958 = vpack.c.bf16 %v2830, %v2830
      %v2959 = vpack.c.bf16 %v2831, %v2831
      %v2960 = vpack.c.bf16 %v2832, %v2832
      %v2961 = vpack.c.bf16 %v2833, %v2833
      %v2962 = vpack.c.bf16 %v2834, %v2834
      %v2963 = vpack.c.bf16 %v2835, %v2835
      %v2964 = vpack.c.bf16 %v2836, %v2836
      %v2965 = vpack.c.bf16 %v2837, %v2837
      %v2966 = vpack.c.bf16 %v2838, %v2838
      %v2967 = vpack.c.bf16 %v2839, %v2839
      %v2968 = vpack.c.bf16 %v2840, %v2840
      %v2969 = vpack.c.bf16 %v2841, %v2841
      %v2970 = vpack.c.bf16 %v2842, %v2842
      %v2971 = vpack.c.bf16 %v2843, %v2843
      %v2972 = vpack.c.bf16 %v2844, %v2844
      %v2973 = vpack.c.bf16 %v2845, %v2845
      %v2974 = vpack.c.bf16 %v2846, %v2846
      %v2975 = vpack.c.bf16 %v2847, %v2847
      %v2976 = vpack.c.bf16 %v2848, %v2848
      %v2977 = vpack.c.bf16 %v2849, %v2849
      %v2978 = vpack.c.bf16 %v2850, %v2850
      %v2979 = vpack.c.bf16 %v2851, %v2851
      %v2980 = vpack.c.bf16 %v2852, %v2852
      %v2981 = vpack.c.bf16 %v2853, %v2853
      %v2982 = vpack.c.bf16 %v2854, %v2854
      %v2983 = vpack.c.bf16 %v2855, %v2855
      %v2984 = vpack.c.bf16 %v2856, %v2856
      %v2985 = vpack.c.bf16 %v2857, %v2857
      %v2986 = vpack.c.bf16 %v2858, %v2858
      %v2987 = vpack.c.bf16 %v2859, %v2859
      %v2988 = vpack.c.bf16 %v2860, %v2860
      %v2989 = vpack.c.bf16 %v2861, %v2861
      %v2990 = vpack.c.bf16 %v2862, %v2862
      %v2991 = vpack.c.bf16 %v2863, %v2863
      %v2992 = vpack.c.bf16 %v2864, %v2864
      %v2993 = vpack.c.bf16 %v2865, %v2865
      %v2994 = vpack.c.bf16 %v2866, %v2866
      %v2995 = vpack.c.bf16 %v2867, %v2867
      %v2996 = vpack.c.bf16 %v2868, %v2868
      %v2997 = vpack.c.bf16 %v2869, %v2869
      %v2998 = vpack.c.bf16 %v2870, %v2870
      %v2999 = vpack.c.bf16 %v2871, %v2871
      %v3000 = vpack.c.bf16 %v2872, %v2872
      %v3001 = vpack.c.bf16 %v2873, %v2873
      %v3002 = vpack.c.bf16 %v2874, %v2874
      %v3003 = vpack.c.bf16 %v2875, %v2875
      %v3004 = vpack.c.bf16 %v2876, %v2876
      %v3005 = vpack.c.bf16 %v2877, %v2877
      %v3006 = vpack.c.bf16 %v2878, %v2878
      %v3007 = vpack.c.bf16 %v2879, %v2879
      %v3008 = vpack.c.bf16 %v2880, %v2880
      %v3009 = vpack.c.bf16 %v2881, %v2881
      %v3010 = vpack.c.bf16 %v2882, %v2882
      %v3011 = vpack.c.bf16 %v2883, %v2883
      %v3012 = vpack.c.bf16 %v2884, %v2884
      %v3013 = vpack.c.bf16 %v2885, %v2885
      %v3014 = vpack.c.bf16 %v2886, %v2886
      %v3015 = vpack.c.bf16 %v2887, %v2887
      %v3016 = vpack.c.bf16 %v2888, %v2888
      %v3017 = vpack.c.bf16 %v2889, %v2889
      %v3018 = vpack.c.bf16 %v2890, %v2890
      %v3019 = vpack.c.bf16 %v2891, %v2891
      %v3020 = vpack.c.bf16 %v2892, %v2892
      %v3021 = vpack.c.bf16 %v2893, %v2893
      %v3022 = vpack.c.bf16 %v2894, %v2894
      %v3023 = vpack.c.bf16 %v2895, %v2895
      %v3024 = vpack.c.bf16 %v2896, %v2896
      %v3025 = vpack.c.bf16 %v2897, %v2897
      %vm3026 = vcmask 519168
      %3027 = vst.msk [vmem:[%s248] sm:$0xf] %vm3026, %v2898
      %3028 = vst.msk [vmem:[%s248 + $0x4] sm:$0xf] %vm3026, %v2899
      %3029 = vst.msk [vmem:[%s248 + $0x8] sm:$0xf] %vm3026, %v2900
      %3030 = vst.msk [vmem:[%s248 + $0xc] sm:$0xf] %vm3026, %v2901
      %3031 = vst.msk [vmem:[%s248 + $0x10] sm:$0xf] %vm3026, %v2902
      %3032 = vst.msk [vmem:[%s248 + $0x14] sm:$0xf] %vm3026, %v2903
      %3033 = vst.msk [vmem:[%s248 + $0x18] sm:$0xf] %vm3026, %v2904
      %3034 = vst.msk [vmem:[%s248 + $0x1c] sm:$0xf] %vm3026, %v2905
      %3035 = vst.msk [vmem:[%s248 + $0x20] sm:$0xf] %vm3026, %v2906
      %3036 = vst.msk [vmem:[%s248 + $0x24] sm:$0xf] %vm3026, %v2907
      %3037 = vst.msk [vmem:[%s248 + $0x28] sm:$0xf] %vm3026, %v2908
      %3038 = vst.msk [vmem:[%s248 + $0x2c] sm:$0xf] %vm3026, %v2909
      %3039 = vst.msk [vmem:[%s248 + $0x30] sm:$0xf] %vm3026, %v2910
      %3040 = vst.msk [vmem:[%s248 + $0x34] sm:$0xf] %vm3026, %v2911
      %3041 = vst.msk [vmem:[%s248 + $0x38] sm:$0xf] %vm3026, %v2912
      %3042 = vst.msk [vmem:[%s248 + $0x3c] sm:$0xf] %vm3026, %v2913
      %3043 = vst.msk [vmem:[%s248 + $0x40] sm:$0xf] %vm3026, %v2914
      %3044 = vst.msk [vmem:[%s248 + $0x44] sm:$0xf] %vm3026, %v2915
      %3045 = vst.msk [vmem:[%s248 + $0x48] sm:$0xf] %vm3026, %v2916
      %3046 = vst.msk [vmem:[%s248 + $0x4c] sm:$0xf] %vm3026, %v2917
      %3047 = vst.msk [vmem:[%s248 + $0x50] sm:$0xf] %vm3026, %v2918
      %3048 = vst.msk [vmem:[%s248 + $0x54] sm:$0xf] %vm3026, %v2919
      %3049 = vst.msk [vmem:[%s248 + $0x58] sm:$0xf] %vm3026, %v2920
      %3050 = vst.msk [vmem:[%s248 + $0x5c] sm:$0xf] %vm3026, %v2921
      %3051 = vst.msk [vmem:[%s248 + $0x60] sm:$0xf] %vm3026, %v2922
      %3052 = vst.msk [vmem:[%s248 + $0x64] sm:$0xf] %vm3026, %v2923
      %3053 = vst.msk [vmem:[%s248 + $0x68] sm:$0xf] %vm3026, %v2924
      %3054 = vst.msk [vmem:[%s248 + $0x6c] sm:$0xf] %vm3026, %v2925
      %3055 = vst.msk [vmem:[%s248 + $0x70] sm:$0xf] %vm3026, %v2926
      %3056 = vst.msk [vmem:[%s248 + $0x74] sm:$0xf] %vm3026, %v2927
      %3057 = vst.msk [vmem:[%s248 + $0x78] sm:$0xf] %vm3026, %v2928
      %3058 = vst.msk [vmem:[%s248 + $0x7c] sm:$0xf] %vm3026, %v2929
      %3059 = vst.msk [vmem:[%s248 + $0x80] sm:$0xf] %vm3026, %v2930
      %3060 = vst.msk [vmem:[%s248 + $0x84] sm:$0xf] %vm3026, %v2931
      %3061 = vst.msk [vmem:[%s248 + $0x88] sm:$0xf] %vm3026, %v2932
      %3062 = vst.msk [vmem:[%s248 + $0x8c] sm:$0xf] %vm3026, %v2933
      %3063 = vst.msk [vmem:[%s248 + $0x90] sm:$0xf] %vm3026, %v2934
      %3064 = vst.msk [vmem:[%s248 + $0x94] sm:$0xf] %vm3026, %v2935
      %3065 = vst.msk [vmem:[%s248 + $0x98] sm:$0xf] %vm3026, %v2936
      %3066 = vst.msk [vmem:[%s248 + $0x9c] sm:$0xf] %vm3026, %v2937
      %3067 = vst.msk [vmem:[%s248 + $0xa0] sm:$0xf] %vm3026, %v2938
      %3068 = vst.msk [vmem:[%s248 + $0xa4] sm:$0xf] %vm3026, %v2939
      %3069 = vst.msk [vmem:[%s248 + $0xa8] sm:$0xf] %vm3026, %v2940
      %3070 = vst.msk [vmem:[%s248 + $0xac] sm:$0xf] %vm3026, %v2941
      %3071 = vst.msk [vmem:[%s248 + $0xb0] sm:$0xf] %vm3026, %v2942
      %3072 = vst.msk [vmem:[%s248 + $0xb4] sm:$0xf] %vm3026, %v2943
      %3073 = vst.msk [vmem:[%s248 + $0xb8] sm:$0xf] %vm3026, %v2944
      %3074 = vst.msk [vmem:[%s248 + $0xbc] sm:$0xf] %vm3026, %v2945
      %3075 = vst.msk [vmem:[%s248 + $0xc0] sm:$0xf] %vm3026, %v2946
      %3076 = vst.msk [vmem:[%s248 + $0xc4] sm:$0xf] %vm3026, %v2947
      %3077 = vst.msk [vmem:[%s248 + $0xc8] sm:$0xf] %vm3026, %v2948
      %3078 = vst.msk [vmem:[%s248 + $0xcc] sm:$0xf] %vm3026, %v2949
      %3079 = vst.msk [vmem:[%s248 + $0xd0] sm:$0xf] %vm3026, %v2950
      %3080 = vst.msk [vmem:[%s248 + $0xd4] sm:$0xf] %vm3026, %v2951
      %3081 = vst.msk [vmem:[%s248 + $0xd8] sm:$0xf] %vm3026, %v2952
      %3082 = vst.msk [vmem:[%s248 + $0xdc] sm:$0xf] %vm3026, %v2953
      %3083 = vst.msk [vmem:[%s248 + $0xe0] sm:$0xf] %vm3026, %v2954
      %3084 = vst.msk [vmem:[%s248 + $0xe4] sm:$0xf] %vm3026, %v2955
      %3085 = vst.msk [vmem:[%s248 + $0xe8] sm:$0xf] %vm3026, %v2956
      %3086 = vst.msk [vmem:[%s248 + $0xec] sm:$0xf] %vm3026, %v2957
      %3087 = vst.msk [vmem:[%s248 + $0xf0] sm:$0xf] %vm3026, %v2958
      %3088 = vst.msk [vmem:[%s248 + $0xf4] sm:$0xf] %vm3026, %v2959
      %3089 = vst.msk [vmem:[%s248 + $0xf8] sm:$0xf] %vm3026, %v2960
      %3090 = vst.msk [vmem:[%s248 + $0xfc] sm:$0xf] %vm3026, %v2961
      %3091 = vst.msk [vmem:[%s248 + $0x100] sm:$0xf] %vm3026, %v2962
      %3092 = vst.msk [vmem:[%s248 + $0x104] sm:$0xf] %vm3026, %v2963
      %3093 = vst.msk [vmem:[%s248 + $0x108] sm:$0xf] %vm3026, %v2964
      %3094 = vst.msk [vmem:[%s248 + $0x10c] sm:$0xf] %vm3026, %v2965
      %3095 = vst.msk [vmem:[%s248 + $0x110] sm:$0xf] %vm3026, %v2966
      %3096 = vst.msk [vmem:[%s248 + $0x114] sm:$0xf] %vm3026, %v2967
      %3097 = vst.msk [vmem:[%s248 + $0x118] sm:$0xf] %vm3026, %v2968
      %3098 = vst.msk [vmem:[%s248 + $0x11c] sm:$0xf] %vm3026, %v2969
      %3099 = vst.msk [vmem:[%s248 + $0x120] sm:$0xf] %vm3026, %v2970
      %3100 = vst.msk [vmem:[%s248 + $0x124] sm:$0xf] %vm3026, %v2971
      %3101 = vst.msk [vmem:[%s248 + $0x128] sm:$0xf] %vm3026, %v2972
      %3102 = vst.msk [vmem:[%s248 + $0x12c] sm:$0xf] %vm3026, %v2973
      %3103 = vst.msk [vmem:[%s248 + $0x130] sm:$0xf] %vm3026, %v2974
      %3104 = vst.msk [vmem:[%s248 + $0x134] sm:$0xf] %vm3026, %v2975
      %3105 = vst.msk [vmem:[%s248 + $0x138] sm:$0xf] %vm3026, %v2976
      %3106 = vst.msk [vmem:[%s248 + $0x13c] sm:$0xf] %vm3026, %v2977
      %3107 = vst.msk [vmem:[%s248 + $0x140] sm:$0xf] %vm3026, %v2978
      %3108 = vst.msk [vmem:[%s248 + $0x144] sm:$0xf] %vm3026, %v2979
      %3109 = vst.msk [vmem:[%s248 + $0x148] sm:$0xf] %vm3026, %v2980
      %3110 = vst.msk [vmem:[%s248 + $0x14c] sm:$0xf] %vm3026, %v2981
      %3111 = vst.msk [vmem:[%s248 + $0x150] sm:$0xf] %vm3026, %v2982
      %3112 = vst.msk [vmem:[%s248 + $0x154] sm:$0xf] %vm3026, %v2983
      %3113 = vst.msk [vmem:[%s248 + $0x158] sm:$0xf] %vm3026, %v2984
      %3114 = vst.msk [vmem:[%s248 + $0x15c] sm:$0xf] %vm3026, %v2985
      %3115 = vst.msk [vmem:[%s248 + $0x160] sm:$0xf] %vm3026, %v2986
      %3116 = vst.msk [vmem:[%s248 + $0x164] sm:$0xf] %vm3026, %v2987
      %3117 = vst.msk [vmem:[%s248 + $0x168] sm:$0xf] %vm3026, %v2988
      %3118 = vst.msk [vmem:[%s248 + $0x16c] sm:$0xf] %vm3026, %v2989
      %3119 = vst.msk [vmem:[%s248 + $0x170] sm:$0xf] %vm3026, %v2990
      %3120 = vst.msk [vmem:[%s248 + $0x174] sm:$0xf] %vm3026, %v2991
      %3121 = vst.msk [vmem:[%s248 + $0x178] sm:$0xf] %vm3026, %v2992
      %3122 = vst.msk [vmem:[%s248 + $0x17c] sm:$0xf] %vm3026, %v2993
      %3123 = vst.msk [vmem:[%s248 + $0x180] sm:$0xf] %vm3026, %v2994
      %3124 = vst.msk [vmem:[%s248 + $0x184] sm:$0xf] %vm3026, %v2995
      %3125 = vst.msk [vmem:[%s248 + $0x188] sm:$0xf] %vm3026, %v2996
      %3126 = vst.msk [vmem:[%s248 + $0x18c] sm:$0xf] %vm3026, %v2997
      %3127 = vst.msk [vmem:[%s248 + $0x190] sm:$0xf] %vm3026, %v2998
      %3128 = vst.msk [vmem:[%s248 + $0x194] sm:$0xf] %vm3026, %v2999
      %3129 = vst.msk [vmem:[%s248 + $0x198] sm:$0xf] %vm3026, %v3000
      %3130 = vst.msk [vmem:[%s248 + $0x19c] sm:$0xf] %vm3026, %v3001
      %3131 = vst.msk [vmem:[%s248 + $0x1a0] sm:$0xf] %vm3026, %v3002
      %3132 = vst.msk [vmem:[%s248 + $0x1a4] sm:$0xf] %vm3026, %v3003
      %3133 = vst.msk [vmem:[%s248 + $0x1a8] sm:$0xf] %vm3026, %v3004
      %3134 = vst.msk [vmem:[%s248 + $0x1ac] sm:$0xf] %vm3026, %v3005
      %3135 = vst.msk [vmem:[%s248 + $0x1b0] sm:$0xf] %vm3026, %v3006
      %3136 = vst.msk [vmem:[%s248 + $0x1b4] sm:$0xf] %vm3026, %v3007
      %3137 = vst.msk [vmem:[%s248 + $0x1b8] sm:$0xf] %vm3026, %v3008
      %3138 = vst.msk [vmem:[%s248 + $0x1bc] sm:$0xf] %vm3026, %v3009
      %3139 = vst.msk [vmem:[%s248 + $0x1c0] sm:$0xf] %vm3026, %v3010
      %3140 = vst.msk [vmem:[%s248 + $0x1c4] sm:$0xf] %vm3026, %v3011
      %3141 = vst.msk [vmem:[%s248 + $0x1c8] sm:$0xf] %vm3026, %v3012
      %3142 = vst.msk [vmem:[%s248 + $0x1cc] sm:$0xf] %vm3026, %v3013
      %3143 = vst.msk [vmem:[%s248 + $0x1d0] sm:$0xf] %vm3026, %v3014
      %3144 = vst.msk [vmem:[%s248 + $0x1d4] sm:$0xf] %vm3026, %v3015
      %3145 = vst.msk [vmem:[%s248 + $0x1d8] sm:$0xf] %vm3026, %v3016
      %3146 = vst.msk [vmem:[%s248 + $0x1dc] sm:$0xf] %vm3026, %v3017
      %3147 = vst.msk [vmem:[%s248 + $0x1e0] sm:$0xf] %vm3026, %v3018
      %3148 = vst.msk [vmem:[%s248 + $0x1e4] sm:$0xf] %vm3026, %v3019
      %3149 = vst.msk [vmem:[%s248 + $0x1e8] sm:$0xf] %vm3026, %v3020
      %3150 = vst.msk [vmem:[%s248 + $0x1ec] sm:$0xf] %vm3026, %v3021
      %3151 = vst.msk [vmem:[%s248 + $0x1f0] sm:$0xf] %vm3026, %v3022
      %3152 = vst.msk [vmem:[%s248 + $0x1f4] sm:$0xf] %vm3026, %v3023
      %3153 = vst.msk [vmem:[%s248 + $0x1f8] sm:$0xf] %vm3026, %v3024
      %3154 = vst.msk [vmem:[%s248 + $0x1fc] sm:$0xf] %vm3026, %v3025
      %s3155 = smul.u32 128, %s16
      %p3156 = scmp.lt.s32.totalorder %s3155, 255
      %s3157 = scalar_select %p3156, %s3155, 255
      %s3158 = smul.addr %s3157, 4
      %s3159 = scalar_lea.vmem %s5, %s3158
      // Predicated region
      $region41: #{tpu_custom_call.1} parent=39 // pred_check
        %p3160 = pneg %p149
      $region42: #{tpu_custom_call.1} parent=39 // pred_check_branch
        %3162 = sbr.rel (%p3160) target = $region44
      $region43: #{tpu_custom_call.1} parent=39 // pred_region
        %s3163 = smul.u32 128, %s16
      $region44: #{tpu_custom_call.1} parent=39 // pred_fallthru
        _
    $region40: #{tpu_custom_call.1} parent=5 // pred_fallthru
      _
    %p3164 = scmp.le.s32.totalorder 2, %s11
    // Predicated region
    $region45: #{tpu_custom_call.1} parent=5 // pred_check
      %p3165 = pneg %p3164
    $region46: #{tpu_custom_call.1} parent=5 // pred_check_branch
      %3167 = sbr.rel (%p3165) target = $region48
    $region47: #{tpu_custom_call.1} parent=5 // pred_region
      %s3168 = ssub.s32 %s11, 2
      // Predicated region
      $region49: #{tpu_custom_call.1} parent=47 // pred_check
        %p3169 = pneg %p155
      $region50: #{tpu_custom_call.1} parent=47 // pred_check_branch
        %3171 = sbr.rel (%p3169) target = $region52
      $region51: #{tpu_custom_call.1} parent=47 // pred_region
        %s3172 = smul.u32 128, %s17
        %p3173 = scmp.lt.s32.totalorder %s3172, 255
        %s3174 = scalar_select %p3173, %s3172, 255
        %s3175 = smul.addr %s3174, 4
        %s3176 = scalar_lea.vmem %s5, %s3175
      $region52: #{tpu_custom_call.1} parent=47 // pred_fallthru
        _
    $region48: #{tpu_custom_call.1} parent=5 // pred_fallthru
      _
  $region6: #{tpu_custom_call.1} parent=0 // loop_footer
    %s15 = sadd.s32 1, %s11
  $region7: #{tpu_custom_call.1} parent=0 // loop_footer_branch
    %10 = sbr.rel target = $region3
  $region8: #{tpu_custom_call.1} parent=0 // loop_exit
    _

</llo_original>
